<compile_context>
chip_gen: v7x
topology: tpu7x:2x2x1
jax: 0.10.0
libtpu: 0.0.40
codegen_flags: <defaults>
</compile_context>

<pallas_src>
import functools

import jax
import jax.numpy as jnp
from jax.experimental import pallas as pl
from jax.experimental.pallas import tpu as pltpu

# ----------------------------------------------------------------------------
# Config / dtypes
# ----------------------------------------------------------------------------
CFG = dict(vocab_size=100, hidden=32, num_layers=2, num_heads=2,
           intermediate=64, max_pos=64, type_vocab=2, n_classes=3)

ACT_DTYPE = jnp.bfloat16        # MXU-native activations / weights
VMEM_LIMIT = 32 * 1024 * 1024   # fits every generation's scoped VMEM (incl. v7x)


def _cparams(sems):
    return pltpu.CompilerParams(dimension_semantics=sems,
                                vmem_limit_bytes=VMEM_LIMIT)


def _row_tile(m, max_tile=256):
    """Largest row tile <= max_tile that divides m (multiple of 8 when tiling)."""
    if m <= max_tile:
        return m
    t = max_tile - (max_tile % 8)
    while t >= 8:
        if m % t == 0:
            return t
        t -= 8
    return m


# ----------------------------------------------------------------------------
# Pallas kernels
# ----------------------------------------------------------------------------
def _dense_kernel(x_ref, w_ref, b_ref, o_ref):
    """o = x @ w + b   (bf16 inputs, f32 accumulate)."""
    y = jnp.dot(x_ref[...], w_ref[...], preferred_element_type=jnp.float32)
    o_ref[...] = (y + b_ref[...]).astype(o_ref.dtype)


def dense(x, w, b):
    M, K = x.shape
    N = w.shape[1]
    tm = _row_tile(M)
    return pl.pallas_call(
        _dense_kernel,
        out_shape=jax.ShapeDtypeStruct((M, N), x.dtype),
        grid=(M // tm,),
        in_specs=[pl.BlockSpec((tm, K), lambda i: (i, 0)),
                  pl.BlockSpec((K, N), lambda i: (0, 0)),
                  pl.BlockSpec((1, N), lambda i: (0, 0))],
        out_specs=pl.BlockSpec((tm, N), lambda i: (i, 0)),
        compiler_params=_cparams(("parallel",)),
    )(x, w, b.reshape(1, N))


def _layernorm_kernel(x_ref, g_ref, b_ref, o_ref, *, eps):
    x = x_ref[...].astype(jnp.float32)
    mean = jnp.mean(x, axis=-1, keepdims=True)
    var = jnp.mean(jnp.square(x - mean), axis=-1, keepdims=True)
    y = (x - mean) * jax.lax.rsqrt(var + eps) * g_ref[...] + b_ref[...]
    o_ref[...] = y.astype(o_ref.dtype)


def layernorm(x, g, b, out_dtype, eps=1e-12):
    M, H = x.shape
    tm = _row_tile(M)
    return pl.pallas_call(
        functools.partial(_layernorm_kernel, eps=eps),
        out_shape=jax.ShapeDtypeStruct((M, H), out_dtype),
        grid=(M // tm,),
        in_specs=[pl.BlockSpec((tm, H), lambda i: (i, 0)),
                  pl.BlockSpec((1, H), lambda i: (0, 0)),
                  pl.BlockSpec((1, H), lambda i: (0, 0))],
        out_specs=pl.BlockSpec((tm, H), lambda i: (i, 0)),
        compiler_params=_cparams(("parallel",)),
    )(x, g.reshape(1, H), b.reshape(1, H))


def _mha_kernel(qkv_ref, mask_ref, o_ref, *, num_heads, head_dim, scale):
    """All heads of one batch element: softmax(q k^T * scale + mask) v."""
    H = num_heads * head_dim
    qkv = qkv_ref[0]          # (S, 3H) bf16 -- lane-dense load of all heads
    mask = mask_ref[0]        # (1, S) f32 additive mask (broadcasts over queries)

    ctx_heads = []
    for h in range(num_heads):            # static unroll; 2D dots only
        qh = qkv[:, h * head_dim:(h + 1) * head_dim]
        kh = qkv[:, H + h * head_dim: H + (h + 1) * head_dim]
        vh = qkv[:, 2 * H + h * head_dim: 2 * H + (h + 1) * head_dim]
        s = jax.lax.dot_general(qh, kh, (((1,), (1,)), ((), ())),
                                preferred_element_type=jnp.float32)   # (S, S)
        s = s * scale + mask
        s = s - jnp.max(s, axis=-1, keepdims=True)
        p = jnp.exp(s)
        p = p * pl.reciprocal(jnp.sum(p, axis=-1, keepdims=True), approx=True)
        ctx_heads.append(jnp.dot(p.astype(vh.dtype), vh,
                                 preferred_element_type=jnp.float32))  # (S, dh)
    # Single lane-dense (S, H) store (no per-head partial stores).
    o_ref[0] = jnp.concatenate(ctx_heads, axis=-1).astype(o_ref.dtype)


def attention(qkv, add_mask, *, num_heads):
    """qkv: (B, S, 3H); add_mask: (B, 1, S) additive mask."""
    # TODO(synk): for S >= 128 switch to an online-softmax (flash) tiling over
    # the key axis; at S=8 the full (S,S) score matrix is a few vregs.
    B, S, threeH = qkv.shape
    H = threeH // 3
    dh = H // num_heads
    scale = 1.0 / (dh ** 0.5)
    return pl.pallas_call(
        functools.partial(_mha_kernel, num_heads=num_heads, head_dim=dh,
                          scale=scale),
        out_shape=jax.ShapeDtypeStruct((B, S, H), qkv.dtype),
        grid=(B,),
        in_specs=[pl.BlockSpec((1, S, threeH), lambda b: (b, 0, 0)),
                  pl.BlockSpec((1, 1, S), lambda b: (b, 0, 0))],
        out_specs=pl.BlockSpec((1, S, H), lambda b: (b, 0, 0)),
        compiler_params=_cparams(("parallel",)),
    )(qkv, add_mask)


def _proj_res_ln_kernel(ctx_ref, res_ref, w_ref, b_ref, g_ref, beta_ref, o_ref,
                        *, eps):
    """o = LayerNorm(ctx @ w + b + residual)."""
    y = jnp.dot(ctx_ref[...], w_ref[...], preferred_element_type=jnp.float32)
    y = y + b_ref[...] + res_ref[...].astype(jnp.float32)
    mean = jnp.mean(y, axis=-1, keepdims=True)
    var = jnp.mean(jnp.square(y - mean), axis=-1, keepdims=True)
    y = (y - mean) * jax.lax.rsqrt(var + eps) * g_ref[...] + beta_ref[...]
    o_ref[...] = y.astype(o_ref.dtype)


def proj_residual_layernorm(ctx, resid, w, b, g, beta, eps=1e-12):
    M, K = ctx.shape
    N = w.shape[1]
    tm = _row_tile(M)
    return pl.pallas_call(
        functools.partial(_proj_res_ln_kernel, eps=eps),
        out_shape=jax.ShapeDtypeStruct((M, N), ctx.dtype),
        grid=(M // tm,),
        in_specs=[pl.BlockSpec((tm, K), lambda i: (i, 0)),
                  pl.BlockSpec((tm, N), lambda i: (i, 0)),
                  pl.BlockSpec((K, N), lambda i: (0, 0)),
                  pl.BlockSpec((1, N), lambda i: (0, 0)),
                  pl.BlockSpec((1, N), lambda i: (0, 0)),
                  pl.BlockSpec((1, N), lambda i: (0, 0))],
        out_specs=pl.BlockSpec((tm, N), lambda i: (i, 0)),
        compiler_params=_cparams(("parallel",)),
    )(ctx, resid, w, b.reshape(1, N), g.reshape(1, N), beta.reshape(1, N))


def _ffn_kernel(x_ref, wi_ref, bi_ref, wo_ref, bo_ref, g_ref, beta_ref, o_ref,
                *, eps):
    """o = LayerNorm(GELU(x @ wi + bi) @ wo + bo + x)."""
    x = x_ref[...]
    h = jnp.dot(x, wi_ref[...], preferred_element_type=jnp.float32) + bi_ref[...]
    # tanh-approximation GELU, computed in f32 (v5e has no bf16 VPU/EUP)
    h = 0.5 * h * (1.0 + jnp.tanh(0.7978845608028654
                                  * (h + 0.044715 * h * h * h)))
    y = jnp.dot(h.astype(wo_ref.dtype), wo_ref[...],
                preferred_element_type=jnp.float32) + bo_ref[...]
    y = y + x.astype(jnp.float32)
    mean = jnp.mean(y, axis=-1, keepdims=True)
    var = jnp.mean(jnp.square(y - mean), axis=-1, keepdims=True)
    y = (y - mean) * jax.lax.rsqrt(var + eps) * g_ref[...] + beta_ref[...]
    o_ref[...] = y.astype(o_ref.dtype)


def ffn_residual_layernorm(x, wi, bi, wo, bo, g, beta, eps=1e-12):
    M, H = x.shape
    I = wi.shape[1]
    tm = _row_tile(M)
    return pl.pallas_call(
        functools.partial(_ffn_kernel, eps=eps),
        out_shape=jax.ShapeDtypeStruct((M, H), x.dtype),
        grid=(M // tm,),
        in_specs=[pl.BlockSpec((tm, H), lambda i: (i, 0)),
                  pl.BlockSpec((H, I), lambda i: (0, 0)),
                  pl.BlockSpec((1, I), lambda i: (0, 0)),
                  pl.BlockSpec((I, H), lambda i: (0, 0)),
                  pl.BlockSpec((1, H), lambda i: (0, 0)),
                  pl.BlockSpec((1, H), lambda i: (0, 0)),
                  pl.BlockSpec((1, H), lambda i: (0, 0))],
        out_specs=pl.BlockSpec((tm, H), lambda i: (i, 0)),
        compiler_params=_cparams(("parallel",)),
    )(x, wi, bi.reshape(1, I), wo, bo.reshape(1, H),
      g.reshape(1, H), beta.reshape(1, H))


def _head_kernel(cls_ref, pw_ref, pb_ref, hw_ref, hb_ref, ow_ref, ob_ref, o_ref,
                 *, n_classes):
    """pooler(tanh) -> hidden -> (eval dropout) -> out -> softmax, padded lanes."""
    x = cls_ref[...]
    pooled = jnp.tanh(jnp.dot(x, pw_ref[...],
                              preferred_element_type=jnp.float32) + pb_ref[...])
    # TODO(synk): training-mode dropout (random mask + 1/(1-p) scaling) not
    # emitted; eval-mode nn.Dropout is the identity.
    hid = jnp.dot(pooled.astype(hw_ref.dtype), hw_ref[...],
                  preferred_element_type=jnp.float32) + hb_ref[...]
    logits = jnp.dot(hid.astype(ow_ref.dtype), ow_ref[...],
                     preferred_element_type=jnp.float32) + ob_ref[...]
    col = jax.lax.broadcasted_iota(jnp.int32, logits.shape, 1)
    logits = jnp.where(col < n_classes, logits, -1e30)   # kill padded lanes
    logits = logits - jnp.max(logits, axis=-1, keepdims=True)
    e = jnp.exp(logits)
    # exact divide here so returned probabilities sum to 1 at f32 precision
    o_ref[...] = (e / jnp.sum(e, axis=-1, keepdims=True)).astype(o_ref.dtype)


def classifier_head(cls, pooler_w, pooler_b, hid_w, hid_b, out_w, out_b,
                    n_classes):
    B, H = cls.shape
    ncp = pl.cdiv(n_classes, 128) * 128     # lane-dense padded logits width
    ow = jnp.zeros((H, ncp), out_w.dtype).at[:, :n_classes].set(out_w)
    ob = jnp.zeros((1, ncp), jnp.float32).at[:, :n_classes].set(
        out_b.astype(jnp.float32))
    probs = pl.pallas_call(
        functools.partial(_head_kernel, n_classes=n_classes),
        out_shape=jax.ShapeDtypeStruct((B, ncp), jnp.float32),
        grid=(1,),
        in_specs=[pl.BlockSpec((B, H), lambda i: (0, 0)),
                  pl.BlockSpec((H, H), lambda i: (0, 0)),
                  pl.BlockSpec((1, H), lambda i: (0, 0)),
                  pl.BlockSpec((H, H), lambda i: (0, 0)),
                  pl.BlockSpec((1, H), lambda i: (0, 0)),
                  pl.BlockSpec((H, ncp), lambda i: (0, 0)),
                  pl.BlockSpec((1, ncp), lambda i: (0, 0))],
        out_specs=pl.BlockSpec((B, ncp), lambda i: (0, 0)),
        compiler_params=_cparams(("arbitrary",)),
    )(cls, pooler_w, pooler_b.reshape(1, H), hid_w, hid_b.reshape(1, H), ow, ob)
    return probs[:, :n_classes]


# ----------------------------------------------------------------------------
# Parameter construction (deterministic, synthetic — no checkpoint loading)
# ----------------------------------------------------------------------------
def _xavier_uniform(key, shape):
    fan_in, fan_out = shape
    limit = (6.0 / (fan_in + fan_out)) ** 0.5
    return jax.random.uniform(key, shape, jnp.float32, -limit, limit)


def _normal(key, shape, std=0.02):
    return std * jax.random.normal(key, shape, jnp.float32)


def init_params(key):
    H, I = CFG["hidden"], CFG["intermediate"]
    keys = iter(jax.random.split(key, 64))
    wd = ACT_DTYPE
    p = {
        "word_emb": _normal(next(keys), (CFG["vocab_size"], H)),
        "pos_emb": _normal(next(keys), (CFG["max_pos"], H)),
        "type_emb": _normal(next(keys), (CFG["type_vocab"], H)),
        "emb_ln_g": jnp.ones((H,), jnp.float32),
        "emb_ln_b": jnp.zeros((H,), jnp.float32),
        "layers": [],
        "pooler_w": _normal(next(keys), (H, H)).astype(wd),
        "pooler_b": jnp.zeros((H,), jnp.float32),
        # classifier head: torch.nn.init.xavier_uniform_ on weights
        "cls_hidden_w": _xavier_uniform(next(keys), (H, H)).astype(wd),
        "cls_hidden_b": jnp.zeros((H,), jnp.float32),
        "cls_out_w": _xavier_uniform(next(keys), (H, CFG["n_classes"])).astype(wd),
        "cls_out_b": jnp.zeros((CFG["n_classes"],), jnp.float32),
    }
    for _ in range(CFG["num_layers"]):
        wq = _normal(next(keys), (H, H))
        wk = _normal(next(keys), (H, H))
        wv = _normal(next(keys), (H, H))
        layer = {
            # fused QKV weight: one (H, 3H) matmul instead of three (H, H) ones
            "w_qkv": jnp.concatenate([wq, wk, wv], axis=1).astype(wd),
            "b_qkv": jnp.zeros((3 * H,), jnp.float32),
            "wo": _normal(next(keys), (H, H)).astype(wd),
            "bo": jnp.zeros((H,), jnp.float32),
            "ln1_g": jnp.ones((H,), jnp.float32),
            "ln1_b": jnp.zeros((H,), jnp.float32),
            "wi": _normal(next(keys), (H, I)).astype(wd),
            "bi": jnp.zeros((I,), jnp.float32),
            "wo2": _normal(next(keys), (I, H)).astype(wd),
            "bo2": jnp.zeros((H,), jnp.float32),
            "ln2_g": jnp.ones((H,), jnp.float32),
            "ln2_b": jnp.zeros((H,), jnp.float32),
        }
        p["layers"].append(layer)
    return p


# ----------------------------------------------------------------------------
# Forward pass (BERT encoder + pooler + classifier head)
# ----------------------------------------------------------------------------
def bert_classifier_forward(params, input_ids, attention_mask):
    B, S = input_ids.shape
    H = CFG["hidden"]
    nh = CFG["num_heads"]

    # Embedding gathers are glue in plain JAX; LayerNorm is a Pallas kernel.
    # TODO(synk): token_type_ids hard-wired to type 0.
    x = (params["word_emb"][input_ids]
         + params["pos_emb"][:S][None, :, :]
         + params["type_emb"][0][None, None, :])              # (B, S, H) f32
    x = layernorm(x.reshape(B * S, H), params["emb_ln_g"], params["emb_ln_b"],
                  out_dtype=ACT_DTYPE)                          # (B*S, H) bf16

    # HF-BERT style additive mask, (B,1,S): attention's index_map picks the row.
    add_mask = ((1.0 - attention_mask.astype(jnp.float32)) * -1e9).reshape(B, 1, S)

    for lp in params["layers"]:
        qkv = dense(x, lp["w_qkv"], lp["b_qkv"])                # (B*S, 3H)
        ctx = attention(qkv.reshape(B, S, 3 * H), add_mask, num_heads=nh)
        ctx = ctx.reshape(B * S, H)
        # attention output projection + residual + LayerNorm (one kernel)
        x = proj_residual_layernorm(ctx, x, lp["wo"], lp["bo"],
                                    lp["ln1_g"], lp["ln1_b"])
        # full FFN block + residual + LayerNorm (one kernel)
        x = ffn_residual_layernorm(x, lp["wi"], lp["bi"], lp["wo2"], lp["bo2"],
                                   lp["ln2_g"], lp["ln2_b"])

    # Pooler input: first ([CLS]) token; head is one fused kernel.
    cls = x.reshape(B, S, H)[:, 0, :]
    probs = classifier_head(cls, params["pooler_w"], params["pooler_b"],
                            params["cls_hidden_w"], params["cls_hidden_b"],
                            params["cls_out_w"], params["cls_out_b"],
                            CFG["n_classes"])
    return probs


# ----------------------------------------------------------------------------
if __name__ == "__main__":
    B, S = 2, 8
    root = jax.random.PRNGKey(0)
    k_params, k_ids = jax.random.split(root)

    params = init_params(k_params)
    input_ids = jax.random.randint(k_ids, (B, S), 0, CFG["vocab_size"],
                                   dtype=jnp.int32)
    attention_mask = jnp.array(
        [[1, 1, 1, 1, 1, 1, 1, 1],
         [1, 1, 1, 1, 1, 0, 0, 0]], dtype=jnp.int32)

    fwd = jax.jit(bert_classifier_forward)
    probs = fwd(params, input_ids, attention_mask)
    probs = jax.block_until_ready(probs)

    assert probs.shape == (B, CFG["n_classes"])
    assert bool(jnp.all(jnp.isfinite(probs)))
    assert bool(jnp.allclose(jnp.sum(probs, axis=1), 1.0, atol=1e-5))
    print("KERNEL_OK")
</pallas_src>

<mosaic_0001>
module attributes {stable_mosaic.version = 11 : i64} {
  func.func @_layernorm_kernel(%arg0: i32, %arg1: memref<16x32xf32, #tpu.memory_space<vmem>>, %arg2: memref<1x32xf32, #tpu.memory_space<vmem>>, %arg3: memref<1x32xf32, #tpu.memory_space<vmem>>, %arg4: memref<16x32xbf16, #tpu.memory_space<vmem>>) attributes {dimension_semantics = [#tpu.dimension_semantics<parallel>], iteration_bounds = array<i64: 1>, scalar_prefetch = 0 : i64, scratch_operands = 0 : i64, tpu.core_type = #tpu.core_type<tc>, window_params = [{transform_indices = @transform_0, window_bounds = array<i64: 16, 32>}, {pipeline_mode = #tpu.pipeline_mode<synchronous>, transform_indices = @transform_1, window_bounds = array<i64: 1, 32>}, {pipeline_mode = #tpu.pipeline_mode<synchronous>, transform_indices = @transform_2, window_bounds = array<i64: 1, 32>}, {transform_indices = @transform_3, window_bounds = array<i64: 16, 32>}]} {
    %c0 = arith.constant 0 : index
    %c0_0 = arith.constant 0 : index
    %0 = vector.load %arg1[%c0, %c0_0] : memref<16x32xf32, #tpu.memory_space<vmem>>, vector<16x32xf32>
    %cst = arith.constant dense<0.000000e+00> : vector<16xf32>
    %1 = vector.multi_reduction <add>, %0, %cst [1] : vector<16x32xf32> to vector<16xf32>
    %2 = vector.shape_cast %1 : vector<16xf32> to vector<16x1xf32>
    %cst_1 = arith.constant 3.200000e+01 : f32
    %3 = vector.broadcast %cst_1 : f32 to vector<16x1xf32>
    %4 = arith.divf %2, %3 : vector<16x1xf32>
    %5 = vector.broadcast %4 : vector<16x1xf32> to vector<16x32xf32>
    %6 = arith.subf %0, %5 : vector<16x32xf32>
    %7 = arith.mulf %6, %6 : vector<16x32xf32>
    %cst_2 = arith.constant dense<0.000000e+00> : vector<16xf32>
    %8 = vector.multi_reduction <add>, %7, %cst_2 [1] : vector<16x32xf32> to vector<16xf32>
    %9 = vector.shape_cast %8 : vector<16xf32> to vector<16x1xf32>
    %cst_3 = arith.constant 3.200000e+01 : f32
    %10 = vector.broadcast %cst_3 : f32 to vector<16x1xf32>
    %11 = arith.divf %9, %10 : vector<16x1xf32>
    %12 = vector.broadcast %4 : vector<16x1xf32> to vector<16x32xf32>
    %13 = arith.subf %0, %12 : vector<16x32xf32>
    %cst_4 = arith.constant 9.99999996E-13 : f32
    %14 = vector.broadcast %cst_4 : f32 to vector<16x1xf32>
    %15 = arith.addf %11, %14 : vector<16x1xf32>
    %16 = math.rsqrt %15 : vector<16x1xf32>
    %17 = vector.broadcast %16 : vector<16x1xf32> to vector<16x32xf32>
    %18 = arith.mulf %13, %17 : vector<16x32xf32>
    %c0_5 = arith.constant 0 : index
    %c0_6 = arith.constant 0 : index
    %19 = vector.load %arg2[%c0_5, %c0_6] : memref<1x32xf32, #tpu.memory_space<vmem>>, vector<1x32xf32>
    %20 = vector.broadcast %19 : vector<1x32xf32> to vector<16x32xf32>
    %21 = arith.mulf %18, %20 : vector<16x32xf32>
    %c0_7 = arith.constant 0 : index
    %c0_8 = arith.constant 0 : index
    %22 = vector.load %arg3[%c0_7, %c0_8] : memref<1x32xf32, #tpu.memory_space<vmem>>, vector<1x32xf32>
    %23 = vector.broadcast %22 : vector<1x32xf32> to vector<16x32xf32>
    %24 = arith.addf %21, %23 : vector<16x32xf32>
    %25 = arith.truncf %24 : vector<16x32xf32> to vector<16x32xbf16>
    %c0_9 = arith.constant 0 : index
    %c0_10 = arith.constant 0 : index
    %26 = vector.load %arg4[%c0_9, %c0_10] : memref<16x32xbf16, #tpu.memory_space<vmem>>, vector<16x32xbf16>
    tpu.vector_store %arg4[%c0_9, %c0_10], %25 {strides = array<i32>} : memref<16x32xbf16, #tpu.memory_space<vmem>>, vector<16x32xbf16>,
    return
  }
  func.func @transform_0(%arg0: i32) -> (i32, i32) {
    %c0_i32 = arith.constant 0 : i32
    %c0_i32_0 = arith.constant 0 : i32
    return %arg0, %c0_i32 : i32, i32
  }
  func.func @transform_1(%arg0: i32) -> (i32, i32) {
    %c0_i32 = arith.constant 0 : i32
    %c0_i32_0 = arith.constant 0 : i32
    %c0_i32_1 = arith.constant 0 : i32
    return %c0_i32, %c0_i32_0 : i32, i32
  }
  func.func @transform_2(%arg0: i32) -> (i32, i32) {
    %c0_i32 = arith.constant 0 : i32
    %c0_i32_0 = arith.constant 0 : i32
    %c0_i32_1 = arith.constant 0 : i32
    return %c0_i32, %c0_i32_0 : i32, i32
  }
  func.func @transform_3(%arg0: i32) -> (i32, i32) {
    %c0_i32 = arith.constant 0 : i32
    %c0_i32_0 = arith.constant 0 : i32
    return %arg0, %c0_i32 : i32, i32
  }
}

module attributes {stable_mosaic.version = 11 : i64} {
  func.func @_dense_kernel(%arg0: i32, %arg1: memref<16x32xbf16, #tpu.memory_space<vmem>>, %arg2: memref<32x96xbf16, #tpu.memory_space<vmem>>, %arg3: memref<1x96xf32, #tpu.memory_space<vmem>>, %arg4: memref<16x96xbf16, #tpu.memory_space<vmem>>) attributes {dimension_semantics = [#tpu.dimension_semantics<parallel>], iteration_bounds = array<i64: 1>, scalar_prefetch = 0 : i64, scratch_operands = 0 : i64, tpu.core_type = #tpu.core_type<tc>, window_params = [{transform_indices = @transform_0, window_bounds = array<i64: 16, 32>}, {pipeline_mode = #tpu.pipeline_mode<synchronous>, transform_indices = @transform_1, window_bounds = array<i64: 32, 96>}, {pipeline_mode = #tpu.pipeline_mode<synchronous>, transform_indices = @transform_2, window_bounds = array<i64: 1, 96>}, {transform_indices = @transform_3, window_bounds = array<i64: 16, 96>}]} {
    %c0 = arith.constant 0 : index
    %c0_0 = arith.constant 0 : index
    %0 = vector.load %arg1[%c0, %c0_0] : memref<16x32xbf16, #tpu.memory_space<vmem>>, vector<16x32xbf16>
    %c0_1 = arith.constant 0 : index
    %c0_2 = arith.constant 0 : index
    %1 = vector.load %arg2[%c0_1, %c0_2] : memref<32x96xbf16, #tpu.memory_space<vmem>>, vector<32x96xbf16>
    %cst = arith.constant dense<0.000000e+00> : vector<16x96xf32>
    %2 = tpu.matmul %0, %1, %cst {dimension_numbers = #tpu.dot_dimension_numbers<[1], [0], [0], [1], [0, 0, 1, 1], [], []>} : vector<16x32xbf16>, vector<32x96xbf16>, vector<16x96xf32> -> vector<16x96xf32>
    %c0_3 = arith.constant 0 : index
    %c0_4 = arith.constant 0 : index
    %3 = vector.load %arg3[%c0_3, %c0_4] : memref<1x96xf32, #tpu.memory_space<vmem>>, vector<1x96xf32>
    %4 = vector.broadcast %3 : vector<1x96xf32> to vector<16x96xf32>
    %5 = arith.addf %2, %4 : vector<16x96xf32>
    %6 = arith.truncf %5 : vector<16x96xf32> to vector<16x96xbf16>
    %c0_5 = arith.constant 0 : index
    %c0_6 = arith.constant 0 : index
    %7 = vector.load %arg4[%c0_5, %c0_6] : memref<16x96xbf16, #tpu.memory_space<vmem>>, vector<16x96xbf16>
    tpu.vector_store %arg4[%c0_5, %c0_6], %6 {strides = array<i32>} : memref<16x96xbf16, #tpu.memory_space<vmem>>, vector<16x96xbf16>,
    return
  }
  func.func @transform_0(%arg0: i32) -> (i32, i32) {
    %c0_i32 = arith.constant 0 : i32
    %c0_i32_0 = arith.constant 0 : i32
    return %arg0, %c0_i32 : i32, i32
  }
  func.func @transform_1(%arg0: i32) -> (i32, i32) {
    %c0_i32 = arith.constant 0 : i32
    %c0_i32_0 = arith.constant 0 : i32
    %c0_i32_1 = arith.constant 0 : i32
    return %c0_i32, %c0_i32_0 : i32, i32
  }
  func.func @transform_2(%arg0: i32) -> (i32, i32) {
    %c0_i32 = arith.constant 0 : i32
    %c0_i32_0 = arith.constant 0 : i32
    %c0_i32_1 = arith.constant 0 : i32
    return %c0_i32, %c0_i32_0 : i32, i32
  }
  func.func @transform_3(%arg0: i32) -> (i32, i32) {
    %c0_i32 = arith.constant 0 : i32
    %c0_i32_0 = arith.constant 0 : i32
    return %arg0, %c0_i32 : i32, i32
  }
}

module attributes {stable_mosaic.version = 11 : i64} {
  func.func @_proj_res_ln_kernel(%arg0: i32, %arg1: memref<16x32xbf16, #tpu.memory_space<vmem>>, %arg2: memref<16x32xbf16, #tpu.memory_space<vmem>>, %arg3: memref<32x32xbf16, #tpu.memory_space<vmem>>, %arg4: memref<1x32xf32, #tpu.memory_space<vmem>>, %arg5: memref<1x32xf32, #tpu.memory_space<vmem>>, %arg6: memref<1x32xf32, #tpu.memory_space<vmem>>, %arg7: memref<16x32xbf16, #tpu.memory_space<vmem>>) attributes {dimension_semantics = [#tpu.dimension_semantics<parallel>], iteration_bounds = array<i64: 1>, scalar_prefetch = 0 : i64, scratch_operands = 0 : i64, tpu.core_type = #tpu.core_type<tc>, window_params = [{transform_indices = @transform_0, window_bounds = array<i64: 16, 32>}, {transform_indices = @transform_1, window_bounds = array<i64: 16, 32>}, {pipeline_mode = #tpu.pipeline_mode<synchronous>, transform_indices = @transform_2, window_bounds = array<i64: 32, 32>}, {pipeline_mode = #tpu.pipeline_mode<synchronous>, transform_indices = @transform_3, window_bounds = array<i64: 1, 32>}, {pipeline_mode = #tpu.pipeline_mode<synchronous>, transform_indices = @transform_4, window_bounds = array<i64: 1, 32>}, {pipeline_mode = #tpu.pipeline_mode<synchronous>, transform_indices = @transform_5, window_bounds = array<i64: 1, 32>}, {transform_indices = @transform_6, window_bounds = array<i64: 16, 32>}]} {
    %c0 = arith.constant 0 : index
    %c0_0 = arith.constant 0 : index
    %0 = vector.load %arg1[%c0, %c0_0] : memref<16x32xbf16, #tpu.memory_space<vmem>>, vector<16x32xbf16>
    %c0_1 = arith.constant 0 : index
    %c0_2 = arith.constant 0 : index
    %1 = vector.load %arg3[%c0_1, %c0_2] : memref<32x32xbf16, #tpu.memory_space<vmem>>, vector<32x32xbf16>
    %cst = arith.constant dense<0.000000e+00> : vector<16x32xf32>
    %2 = tpu.matmul %0, %1, %cst {dimension_numbers = #tpu.dot_dimension_numbers<[1], [0], [0], [1], [0, 0, 1, 1], [], []>} : vector<16x32xbf16>, vector<32x32xbf16>, vector<16x32xf32> -> vector<16x32xf32>
    %c0_3 = arith.constant 0 : index
    %c0_4 = arith.constant 0 : index
    %3 = vector.load %arg4[%c0_3, %c0_4] : memref<1x32xf32, #tpu.memory_space<vmem>>, vector<1x32xf32>
    %4 = vector.broadcast %3 : vector<1x32xf32> to vector<16x32xf32>
    %5 = arith.addf %2, %4 : vector<16x32xf32>
    %c0_5 = arith.constant 0 : index
    %c0_6 = arith.constant 0 : index
    %6 = vector.load %arg2[%c0_5, %c0_6] : memref<16x32xbf16, #tpu.memory_space<vmem>>, vector<16x32xbf16>
    %7 = arith.extf %6 : vector<16x32xbf16> to vector<16x32xf32>
    %8 = arith.addf %5, %7 : vector<16x32xf32>
    %cst_7 = arith.constant dense<0.000000e+00> : vector<16xf32>
    %9 = vector.multi_reduction <add>, %8, %cst_7 [1] : vector<16x32xf32> to vector<16xf32>
    %10 = vector.shape_cast %9 : vector<16xf32> to vector<16x1xf32>
    %cst_8 = arith.constant 3.200000e+01 : f32
    %11 = vector.broadcast %cst_8 : f32 to vector<16x1xf32>
    %12 = arith.divf %10, %11 : vector<16x1xf32>
    %13 = vector.broadcast %12 : vector<16x1xf32> to vector<16x32xf32>
    %14 = arith.subf %8, %13 : vector<16x32xf32>
    %15 = arith.mulf %14, %14 : vector<16x32xf32>
    %cst_9 = arith.constant dense<0.000000e+00> : vector<16xf32>
    %16 = vector.multi_reduction <add>, %15, %cst_9 [1] : vector<16x32xf32> to vector<16xf32>
    %17 = vector.shape_cast %16 : vector<16xf32> to vector<16x1xf32>
    %cst_10 = arith.constant 3.200000e+01 : f32
    %18 = vector.broadcast %cst_10 : f32 to vector<16x1xf32>
    %19 = arith.divf %17, %18 : vector<16x1xf32>
    %20 = vector.broadcast %12 : vector<16x1xf32> to vector<16x32xf32>
    %21 = arith.subf %8, %20 : vector<16x32xf32>
    %cst_11 = arith.constant 9.99999996E-13 : f32
    %22 = vector.broadcast %cst_11 : f32 to vector<16x1xf32>
    %23 = arith.addf %19, %22 : vector<16x1xf32>
    %24 = math.rsqrt %23 : vector<16x1xf32>
    %25 = vector.broadcast %24 : vector<16x1xf32> to vector<16x32xf32>
    %26 = arith.mulf %21, %25 : vector<16x32xf32>
    %c0_12 = arith.constant 0 : index
    %c0_13 = arith.constant 0 : index
    %27 = vector.load %arg5[%c0_12, %c0_13] : memref<1x32xf32, #tpu.memory_space<vmem>>, vector<1x32xf32>
    %28 = vector.broadcast %27 : vector<1x32xf32> to vector<16x32xf32>
    %29 = arith.mulf %26, %28 : vector<16x32xf32>
    %c0_14 = arith.constant 0 : index
    %c0_15 = arith.constant 0 : index
    %30 = vector.load %arg6[%c0_14, %c0_15] : memref<1x32xf32, #tpu.memory_space<vmem>>, vector<1x32xf32>
    %31 = vector.broadcast %30 : vector<1x32xf32> to vector<16x32xf32>
    %32 = arith.addf %29, %31 : vector<16x32xf32>
    %33 = arith.truncf %32 : vector<16x32xf32> to vector<16x32xbf16>
    %c0_16 = arith.constant 0 : index
    %c0_17 = arith.constant 0 : index
    %34 = vector.load %arg7[%c0_16, %c0_17] : memref<16x32xbf16, #tpu.memory_space<vmem>>, vector<16x32xbf16>
    tpu.vector_store %arg7[%c0_16, %c0_17], %33 {strides = array<i32>} : memref<16x32xbf16, #tpu.memory_space<vmem>>, vector<16x32xbf16>,
    return
  }
  func.func @transform_0(%arg0: i32) -> (i32, i32) {
    %c0_i32 = arith.constant 0 : i32
    %c0_i32_0 = arith.constant 0 : i32
    return %arg0, %c0_i32 : i32, i32
  }
  func.func @transform_1(%arg0: i32) -> (i32, i32) {
    %c0_i32 = arith.constant 0 : i32
    %c0_i32_0 = arith.constant 0 : i32
    return %arg0, %c0_i32 : i32, i32
  }
  func.func @transform_2(%arg0: i32) -> (i32, i32) {
    %c0_i32 = arith.constant 0 : i32
    %c0_i32_0 = arith.constant 0 : i32
    %c0_i32_1 = arith.constant 0 : i32
    return %c0_i32, %c0_i32_0 : i32, i32
  }
  func.func @transform_3(%arg0: i32) -> (i32, i32) {
    %c0_i32 = arith.constant 0 : i32
    %c0_i32_0 = arith.constant 0 : i32
    %c0_i32_1 = arith.constant 0 : i32
    return %c0_i32, %c0_i32_0 : i32, i32
  }
  func.func @transform_4(%arg0: i32) -> (i32, i32) {
    %c0_i32 = arith.constant 0 : i32
    %c0_i32_0 = arith.constant 0 : i32
    %c0_i32_1 = arith.constant 0 : i32
    return %c0_i32, %c0_i32_0 : i32, i32
  }
  func.func @transform_5(%arg0: i32) -> (i32, i32) {
    %c0_i32 = arith.constant 0 : i32
    %c0_i32_0 = arith.constant 0 : i32
    %c0_i32_1 = arith.constant 0 : i32
    return %c0_i32, %c0_i32_0 : i32, i32
  }
  func.func @transform_6(%arg0: i32) -> (i32, i32) {
    %c0_i32 = arith.constant 0 : i32
    %c0_i32_0 = arith.constant 0 : i32
    return %arg0, %c0_i32 : i32, i32
  }
}

module attributes {stable_mosaic.version = 11 : i64} {
  func.func @_mha_kernel(%arg0: i32, %arg1: memref<1x8x96xbf16, #tpu.memory_space<vmem>>, %arg2: memref<1x1x8xf32, #tpu.memory_space<vmem>>, %arg3: memref<1x8x32xbf16, #tpu.memory_space<vmem>>) attributes {dimension_semantics = [#tpu.dimension_semantics<parallel>], iteration_bounds = array<i64: 2>, scalar_prefetch = 0 : i64, scratch_operands = 0 : i64, tpu.core_type = #tpu.core_type<tc>, window_params = [{transform_indices = @transform_0, window_bounds = array<i64: 1, 8, 96>}, {transform_indices = @transform_1, window_bounds = array<i64: 1, 1, 8>}, {transform_indices = @transform_2, window_bounds = array<i64: 1, 8, 32>}]} {
    %c0 = arith.constant 0 : index
    %c0_0 = arith.constant 0 : index
    %c0_1 = arith.constant 0 : index
    %0 = vector.load %arg1[%c0, %c0_0, %c0_1] : memref<1x8x96xbf16, #tpu.memory_space<vmem>>, vector<1x8x96xbf16>
    %1 = vector.shape_cast %0 : vector<1x8x96xbf16> to vector<8x96xbf16>
    %c0_2 = arith.constant 0 : index
    %c0_3 = arith.constant 0 : index
    %c0_4 = arith.constant 0 : index
    %2 = vector.load %arg2[%c0_2, %c0_3, %c0_4] : memref<1x1x8xf32, #tpu.memory_space<vmem>>, vector<1x1x8xf32>
    %3 = vector.shape_cast %2 : vector<1x1x8xf32> to vector<1x8xf32>
    %4 = vector.extract_strided_slice %1 {offsets = [0, 0], sizes = [8, 16], strides = [1, 1]} : vector<8x96xbf16> to vector<8x16xbf16>
    %5 = vector.extract_strided_slice %1 {offsets = [0, 32], sizes = [8, 16], strides = [1, 1]} : vector<8x96xbf16> to vector<8x16xbf16>
    %6 = vector.extract_strided_slice %1 {offsets = [0, 64], sizes = [8, 16], strides = [1, 1]} : vector<8x96xbf16> to vector<8x16xbf16>
    %cst = arith.constant dense<0.000000e+00> : vector<8x8xf32>
    %7 = tpu.matmul %4, %5, %cst {dimension_numbers = #tpu.dot_dimension_numbers<[1], [1], [0], [0], [0, 0, 1, 0], [], []>} : vector<8x16xbf16>, vector<8x16xbf16>, vector<8x8xf32> -> vector<8x8xf32>
    %cst_5 = arith.constant 2.500000e-01 : f32
    %8 = vector.broadcast %cst_5 : f32 to vector<8x8xf32>
    %9 = arith.mulf %7, %8 : vector<8x8xf32>
    %10 = vector.broadcast %3 : vector<1x8xf32> to vector<8x8xf32>
    %11 = arith.addf %9, %10 : vector<8x8xf32>
    %cst_6 = arith.constant dense<0xFF800000> : vector<8xf32>
    %12 = vector.multi_reduction <maximumf>, %11, %cst_6 [1] : vector<8x8xf32> to vector<8xf32>
    %13 = vector.shape_cast %12 : vector<8xf32> to vector<8x1xf32>
    %14 = vector.broadcast %13 : vector<8x1xf32> to vector<8x8xf32>
    %15 = arith.subf %11, %14 : vector<8x8xf32>
    %16 = math.exp %15 : vector<8x8xf32>
    %cst_7 = arith.constant dense<0.000000e+00> : vector<8xf32>
    %17 = vector.multi_reduction <add>, %16, %cst_7 [1] : vector<8x8xf32> to vector<8xf32>
    %18 = vector.shape_cast %17 : vector<8xf32> to vector<8x1xf32>
    %19 = tpu.reciprocal %18 {approx = true} : vector<8x1xf32> -> vector<8x1xf32>
    %20 = vector.broadcast %19 : vector<8x1xf32> to vector<8x8xf32>
    %21 = arith.mulf %16, %20 : vector<8x8xf32>
    %22 = arith.truncf %21 : vector<8x8xf32> to vector<8x8xbf16>
    %cst_8 = arith.constant dense<0.000000e+00> : vector<8x16xf32>
    %23 = tpu.matmul %22, %6, %cst_8 {dimension_numbers = #tpu.dot_dimension_numbers<[1], [0], [0], [1], [0, 0, 1, 1], [], []>} : vector<8x8xbf16>, vector<8x16xbf16>, vector<8x16xf32> -> vector<8x16xf32>
    %24 = vector.extract_strided_slice %1 {offsets = [0, 16], sizes = [8, 16], strides = [1, 1]} : vector<8x96xbf16> to vector<8x16xbf16>
    %25 = vector.extract_strided_slice %1 {offsets = [0, 48], sizes = [8, 16], strides = [1, 1]} : vector<8x96xbf16> to vector<8x16xbf16>
    %26 = vector.extract_strided_slice %1 {offsets = [0, 80], sizes = [8, 16], strides = [1, 1]} : vector<8x96xbf16> to vector<8x16xbf16>
    %cst_9 = arith.constant dense<0.000000e+00> : vector<8x8xf32>
    %27 = tpu.matmul %24, %25, %cst_9 {dimension_numbers = #tpu.dot_dimension_numbers<[1], [1], [0], [0], [0, 0, 1, 0], [], []>} : vector<8x16xbf16>, vector<8x16xbf16>, vector<8x8xf32> -> vector<8x8xf32>
    %cst_10 = arith.constant 2.500000e-01 : f32
    %28 = vector.broadcast %cst_10 : f32 to vector<8x8xf32>
    %29 = arith.mulf %27, %28 : vector<8x8xf32>
    %30 = vector.broadcast %3 : vector<1x8xf32> to vector<8x8xf32>
    %31 = arith.addf %29, %30 : vector<8x8xf32>
    %cst_11 = arith.constant dense<0xFF800000> : vector<8xf32>
    %32 = vector.multi_reduction <maximumf>, %31, %cst_11 [1] : vector<8x8xf32> to vector<8xf32>
    %33 = vector.shape_cast %32 : vector<8xf32> to vector<8x1xf32>
    %34 = vector.broadcast %33 : vector<8x1xf32> to vector<8x8xf32>
    %35 = arith.subf %31, %34 : vector<8x8xf32>
    %36 = math.exp %35 : vector<8x8xf32>
    %cst_12 = arith.constant dense<0.000000e+00> : vector<8xf32>
    %37 = vector.multi_reduction <add>, %36, %cst_12 [1] : vector<8x8xf32> to vector<8xf32>
    %38 = vector.shape_cast %37 : vector<8xf32> to vector<8x1xf32>
    %39 = tpu.reciprocal %38 {approx = true} : vector<8x1xf32> -> vector<8x1xf32>
    %40 = vector.broadcast %39 : vector<8x1xf32> to vector<8x8xf32>
    %41 = arith.mulf %36, %40 : vector<8x8xf32>
    %42 = arith.truncf %41 : vector<8x8xf32> to vector<8x8xbf16>
    %cst_13 = arith.constant dense<0.000000e+00> : vector<8x16xf32>
    %43 = tpu.matmul %42, %26, %cst_13 {dimension_numbers = #tpu.dot_dimension_numbers<[1], [0], [0], [1], [0, 0, 1, 1], [], []>} : vector<8x8xbf16>, vector<8x16xbf16>, vector<8x16xf32> -> vector<8x16xf32>
    %44 = tpu.concatenate %23, %43 in 1 : vector<8x16xf32>, vector<8x16xf32> -> vector<8x32xf32>
    %45 = arith.truncf %44 : vector<8x32xf32> to vector<8x32xbf16>
    %c0_14 = arith.constant 0 : index
    %c0_15 = arith.constant 0 : index
    %c0_16 = arith.constant 0 : index
    %46 = vector.load %arg3[%c0_14, %c0_15, %c0_16] : memref<1x8x32xbf16, #tpu.memory_space<vmem>>, vector<1x8x32xbf16>
    %47 = vector.shape_cast %46 : vector<1x8x32xbf16> to vector<8x32xbf16>
    %48 = vector.shape_cast %45 : vector<8x32xbf16> to vector<1x8x32xbf16>
    tpu.vector_store %arg3[%c0_14, %c0_15, %c0_16], %48 {strides = array<i32>} : memref<1x8x32xbf16, #tpu.memory_space<vmem>>, vector<1x8x32xbf16>,
    return
  }
  func.func @transform_0(%arg0: i32) -> (i32, i32, i32) {
    %c0_i32 = arith.constant 0 : i32
    %c0_i32_0 = arith.constant 0 : i32
    %c0_i32_1 = arith.constant 0 : i32
    return %arg0, %c0_i32, %c0_i32_0 : i32, i32, i32
  }
  func.func @transform_1(%arg0: i32) -> (i32, i32, i32) {
    %c0_i32 = arith.constant 0 : i32
    %c0_i32_0 = arith.constant 0 : i32
    %c0_i32_1 = arith.constant 0 : i32
    return %arg0, %c0_i32, %c0_i32_0 : i32, i32, i32
  }
  func.func @transform_2(%arg0: i32) -> (i32, i32, i32) {
    %c0_i32 = arith.constant 0 : i32
    %c0_i32_0 = arith.constant 0 : i32
    %c0_i32_1 = arith.constant 0 : i32
    return %arg0, %c0_i32, %c0_i32_0 : i32, i32, i32
  }
}

module attributes {stable_mosaic.version = 11 : i64} {
  func.func @_ffn_kernel(%arg0: i32, %arg1: memref<16x32xbf16, #tpu.memory_space<vmem>>, %arg2: memref<32x64xbf16, #tpu.memory_space<vmem>>, %arg3: memref<1x64xf32, #tpu.memory_space<vmem>>, %arg4: memref<64x32xbf16, #tpu.memory_space<vmem>>, %arg5: memref<1x32xf32, #tpu.memory_space<vmem>>, %arg6: memref<1x32xf32, #tpu.memory_space<vmem>>, %arg7: memref<1x32xf32, #tpu.memory_space<vmem>>, %arg8: memref<16x32xbf16, #tpu.memory_space<vmem>>) attributes {dimension_semantics = [#tpu.dimension_semantics<parallel>], iteration_bounds = array<i64: 1>, scalar_prefetch = 0 : i64, scratch_operands = 0 : i64, tpu.core_type = #tpu.core_type<tc>, window_params = [{transform_indices = @transform_0, window_bounds = array<i64: 16, 32>}, {pipeline_mode = #tpu.pipeline_mode<synchronous>, transform_indices = @transform_1, window_bounds = array<i64: 32, 64>}, {pipeline_mode = #tpu.pipeline_mode<synchronous>, transform_indices = @transform_2, window_bounds = array<i64: 1, 64>}, {pipeline_mode = #tpu.pipeline_mode<synchronous>, transform_indices = @transform_3, window_bounds = array<i64: 64, 32>}, {pipeline_mode = #tpu.pipeline_mode<synchronous>, transform_indices = @transform_4, window_bounds = array<i64: 1, 32>}, {pipeline_mode = #tpu.pipeline_mode<synchronous>, transform_indices = @transform_5, window_bounds = array<i64: 1, 32>}, {pipeline_mode = #tpu.pipeline_mode<synchronous>, transform_indices = @transform_6, window_bounds = array<i64: 1, 32>}, {transform_indices = @transform_7, window_bounds = array<i64: 16, 32>}]} {
    %c0 = arith.constant 0 : index
    %c0_0 = arith.constant 0 : index
    %0 = vector.load %arg1[%c0, %c0_0] : memref<16x32xbf16, #tpu.memory_space<vmem>>, vector<16x32xbf16>
    %c0_1 = arith.constant 0 : index
    %c0_2 = arith.constant 0 : index
    %1 = vector.load %arg2[%c0_1, %c0_2] : memref<32x64xbf16, #tpu.memory_space<vmem>>, vector<32x64xbf16>
    %cst = arith.constant dense<0.000000e+00> : vector<16x64xf32>
    %2 = tpu.matmul %0, %1, %cst {dimension_numbers = #tpu.dot_dimension_numbers<[1], [0], [0], [1], [0, 0, 1, 1], [], []>} : vector<16x32xbf16>, vector<32x64xbf16>, vector<16x64xf32> -> vector<16x64xf32>
    %c0_3 = arith.constant 0 : index
    %c0_4 = arith.constant 0 : index
    %3 = vector.load %arg3[%c0_3, %c0_4] : memref<1x64xf32, #tpu.memory_space<vmem>>, vector<1x64xf32>
    %4 = vector.broadcast %3 : vector<1x64xf32> to vector<16x64xf32>
    %5 = arith.addf %2, %4 : vector<16x64xf32>
    %cst_5 = arith.constant 5.000000e-01 : f32
    %6 = vector.broadcast %cst_5 : f32 to vector<16x64xf32>
    %7 = arith.mulf %6, %5 : vector<16x64xf32>
    %cst_6 = arith.constant 4.471500e-02 : f32
    %8 = vector.broadcast %cst_6 : f32 to vector<16x64xf32>
    %9 = arith.mulf %8, %5 : vector<16x64xf32>
    %10 = arith.mulf %9, %5 : vector<16x64xf32>
    %11 = arith.mulf %10, %5 : vector<16x64xf32>
    %12 = arith.addf %5, %11 : vector<16x64xf32>
    %cst_7 = arith.constant 0.797884583 : f32
    %13 = vector.broadcast %cst_7 : f32 to vector<16x64xf32>
    %14 = arith.mulf %13, %12 : vector<16x64xf32>
    %15 = math.tanh %14 : vector<16x64xf32>
    %cst_8 = arith.constant 1.000000e+00 : f32
    %16 = vector.broadcast %cst_8 : f32 to vector<16x64xf32>
    %17 = arith.addf %16, %15 : vector<16x64xf32>
    %18 = arith.mulf %7, %17 : vector<16x64xf32>
    %19 = arith.truncf %18 : vector<16x64xf32> to vector<16x64xbf16>
    %c0_9 = arith.constant 0 : index
    %c0_10 = arith.constant 0 : index
    %20 = vector.load %arg4[%c0_9, %c0_10] : memref<64x32xbf16, #tpu.memory_space<vmem>>, vector<64x32xbf16>
    %cst_11 = arith.constant dense<0.000000e+00> : vector<16x32xf32>
    %21 = tpu.matmul %19, %20, %cst_11 {dimension_numbers = #tpu.dot_dimension_numbers<[1], [0], [0], [1], [0, 0, 1, 1], [], []>} : vector<16x64xbf16>, vector<64x32xbf16>, vector<16x32xf32> -> vector<16x32xf32>
    %c0_12 = arith.constant 0 : index
    %c0_13 = arith.constant 0 : index
    %22 = vector.load %arg5[%c0_12, %c0_13] : memref<1x32xf32, #tpu.memory_space<vmem>>, vector<1x32xf32>
    %23 = vector.broadcast %22 : vector<1x32xf32> to vector<16x32xf32>
    %24 = arith.addf %21, %23 : vector<16x32xf32>
    %25 = arith.extf %0 : vector<16x32xbf16> to vector<16x32xf32>
    %26 = arith.addf %24, %25 : vector<16x32xf32>
    %cst_14 = arith.constant dense<0.000000e+00> : vector<16xf32>
    %27 = vector.multi_reduction <add>, %26, %cst_14 [1] : vector<16x32xf32> to vector<16xf32>
    %28 = vector.shape_cast %27 : vector<16xf32> to vector<16x1xf32>
    %cst_15 = arith.constant 3.200000e+01 : f32
    %29 = vector.broadcast %cst_15 : f32 to vector<16x1xf32>
    %30 = arith.divf %28, %29 : vector<16x1xf32>
    %31 = vector.broadcast %30 : vector<16x1xf32> to vector<16x32xf32>
    %32 = arith.subf %26, %31 : vector<16x32xf32>
    %33 = arith.mulf %32, %32 : vector<16x32xf32>
    %cst_16 = arith.constant dense<0.000000e+00> : vector<16xf32>
    %34 = vector.multi_reduction <add>, %33, %cst_16 [1] : vector<16x32xf32> to vector<16xf32>
    %35 = vector.shape_cast %34 : vector<16xf32> to vector<16x1xf32>
    %cst_17 = arith.constant 3.200000e+01 : f32
    %36 = vector.broadcast %cst_17 : f32 to vector<16x1xf32>
    %37 = arith.divf %35, %36 : vector<16x1xf32>
    %38 = vector.broadcast %30 : vector<16x1xf32> to vector<16x32xf32>
    %39 = arith.subf %26, %38 : vector<16x32xf32>
    %cst_18 = arith.constant 9.99999996E-13 : f32
    %40 = vector.broadcast %cst_18 : f32 to vector<16x1xf32>
    %41 = arith.addf %37, %40 : vector<16x1xf32>
    %42 = math.rsqrt %41 : vector<16x1xf32>
    %43 = vector.broadcast %42 : vector<16x1xf32> to vector<16x32xf32>
    %44 = arith.mulf %39, %43 : vector<16x32xf32>
    %c0_19 = arith.constant 0 : index
    %c0_20 = arith.constant 0 : index
    %45 = vector.load %arg6[%c0_19, %c0_20] : memref<1x32xf32, #tpu.memory_space<vmem>>, vector<1x32xf32>
    %46 = vector.broadcast %45 : vector<1x32xf32> to vector<16x32xf32>
    %47 = arith.mulf %44, %46 : vector<16x32xf32>
    %c0_21 = arith.constant 0 : index
    %c0_22 = arith.constant 0 : index
    %48 = vector.load %arg7[%c0_21, %c0_22] : memref<1x32xf32, #tpu.memory_space<vmem>>, vector<1x32xf32>
    %49 = vector.broadcast %48 : vector<1x32xf32> to vector<16x32xf32>
    %50 = arith.addf %47, %49 : vector<16x32xf32>
    %51 = arith.truncf %50 : vector<16x32xf32> to vector<16x32xbf16>
    %c0_23 = arith.constant 0 : index
    %c0_24 = arith.constant 0 : index
    %52 = vector.load %arg8[%c0_23, %c0_24] : memref<16x32xbf16, #tpu.memory_space<vmem>>, vector<16x32xbf16>
    tpu.vector_store %arg8[%c0_23, %c0_24], %51 {strides = array<i32>} : memref<16x32xbf16, #tpu.memory_space<vmem>>, vector<16x32xbf16>,
    return
  }
  func.func @transform_0(%arg0: i32) -> (i32, i32) {
    %c0_i32 = arith.constant 0 : i32
    %c0_i32_0 = arith.constant 0 : i32
    return %arg0, %c0_i32 : i32, i32
  }
  func.func @transform_1(%arg0: i32) -> (i32, i32) {
    %c0_i32 = arith.constant 0 : i32
    %c0_i32_0 = arith.constant 0 : i32
    %c0_i32_1 = arith.constant 0 : i32
    return %c0_i32, %c0_i32_0 : i32, i32
  }
  func.func @transform_2(%arg0: i32) -> (i32, i32) {
    %c0_i32 = arith.constant 0 : i32
    %c0_i32_0 = arith.constant 0 : i32
    %c0_i32_1 = arith.constant 0 : i32
    return %c0_i32, %c0_i32_0 : i32, i32
  }
  func.func @transform_3(%arg0: i32) -> (i32, i32) {
    %c0_i32 = arith.constant 0 : i32
    %c0_i32_0 = arith.constant 0 : i32
    %c0_i32_1 = arith.constant 0 : i32
    return %c0_i32, %c0_i32_0 : i32, i32
  }
  func.func @transform_4(%arg0: i32) -> (i32, i32) {
    %c0_i32 = arith.constant 0 : i32
    %c0_i32_0 = arith.constant 0 : i32
    %c0_i32_1 = arith.constant 0 : i32
    return %c0_i32, %c0_i32_0 : i32, i32
  }
  func.func @transform_5(%arg0: i32) -> (i32, i32) {
    %c0_i32 = arith.constant 0 : i32
    %c0_i32_0 = arith.constant 0 : i32
    %c0_i32_1 = arith.constant 0 : i32
    return %c0_i32, %c0_i32_0 : i32, i32
  }
  func.func @transform_6(%arg0: i32) -> (i32, i32) {
    %c0_i32 = arith.constant 0 : i32
    %c0_i32_0 = arith.constant 0 : i32
    %c0_i32_1 = arith.constant 0 : i32
    return %c0_i32, %c0_i32_0 : i32, i32
  }
  func.func @transform_7(%arg0: i32) -> (i32, i32) {
    %c0_i32 = arith.constant 0 : i32
    %c0_i32_0 = arith.constant 0 : i32
    return %arg0, %c0_i32 : i32, i32
  }
}

module attributes {stable_mosaic.version = 11 : i64} {
  func.func @_head_kernel(%arg0: i32, %arg1: memref<2x32xbf16, #tpu.memory_space<vmem>>, %arg2: memref<32x32xbf16, #tpu.memory_space<vmem>>, %arg3: memref<1x32xf32, #tpu.memory_space<vmem>>, %arg4: memref<32x32xbf16, #tpu.memory_space<vmem>>, %arg5: memref<1x32xf32, #tpu.memory_space<vmem>>, %arg6: memref<32x128xbf16, #tpu.memory_space<vmem>>, %arg7: memref<1x128xf32, #tpu.memory_space<vmem>>, %arg8: memref<2x128xf32, #tpu.memory_space<vmem>>) attributes {dimension_semantics = [#tpu.dimension_semantics<arbitrary>], iteration_bounds = array<i64: 1>, scalar_prefetch = 0 : i64, scratch_operands = 0 : i64, tpu.core_type = #tpu.core_type<tc>, window_params = [{pipeline_mode = #tpu.pipeline_mode<synchronous>, transform_indices = @transform_0, window_bounds = array<i64: 2, 32>}, {pipeline_mode = #tpu.pipeline_mode<synchronous>, transform_indices = @transform_1, window_bounds = array<i64: 32, 32>}, {pipeline_mode = #tpu.pipeline_mode<synchronous>, transform_indices = @transform_2, window_bounds = array<i64: 1, 32>}, {pipeline_mode = #tpu.pipeline_mode<synchronous>, transform_indices = @transform_3, window_bounds = array<i64: 32, 32>}, {pipeline_mode = #tpu.pipeline_mode<synchronous>, transform_indices = @transform_4, window_bounds = array<i64: 1, 32>}, {pipeline_mode = #tpu.pipeline_mode<synchronous>, transform_indices = @transform_5, window_bounds = array<i64: 32, 128>}, {pipeline_mode = #tpu.pipeline_mode<synchronous>, transform_indices = @transform_6, window_bounds = array<i64: 1, 128>}, {pipeline_mode = #tpu.pipeline_mode<synchronous>, transform_indices = @transform_7, window_bounds = array<i64: 2, 128>}]} {
    %c0 = arith.constant 0 : index
    %c0_0 = arith.constant 0 : index
    %0 = vector.load %arg1[%c0, %c0_0] : memref<2x32xbf16, #tpu.memory_space<vmem>>, vector<2x32xbf16>
    %c0_1 = arith.constant 0 : index
    %c0_2 = arith.constant 0 : index
    %1 = vector.load %arg2[%c0_1, %c0_2] : memref<32x32xbf16, #tpu.memory_space<vmem>>, vector<32x32xbf16>
    %cst = arith.constant dense<0.000000e+00> : vector<2x32xf32>
    %2 = tpu.matmul %0, %1, %cst {dimension_numbers = #tpu.dot_dimension_numbers<[1], [0], [0], [1], [0, 0, 1, 1], [], []>} : vector<2x32xbf16>, vector<32x32xbf16>, vector<2x32xf32> -> vector<2x32xf32>
    %c0_3 = arith.constant 0 : index
    %c0_4 = arith.constant 0 : index
    %3 = vector.load %arg3[%c0_3, %c0_4] : memref<1x32xf32, #tpu.memory_space<vmem>>, vector<1x32xf32>
    %4 = vector.broadcast %3 : vector<1x32xf32> to vector<2x32xf32>
    %5 = arith.addf %2, %4 : vector<2x32xf32>
    %6 = math.tanh %5 : vector<2x32xf32>
    %7 = arith.truncf %6 : vector<2x32xf32> to vector<2x32xbf16>
    %c0_5 = arith.constant 0 : index
    %c0_6 = arith.constant 0 : index
    %8 = vector.load %arg4[%c0_5, %c0_6] : memref<32x32xbf16, #tpu.memory_space<vmem>>, vector<32x32xbf16>
    %cst_7 = arith.constant dense<0.000000e+00> : vector<2x32xf32>
    %9 = tpu.matmul %7, %8, %cst_7 {dimension_numbers = #tpu.dot_dimension_numbers<[1], [0], [0], [1], [0, 0, 1, 1], [], []>} : vector<2x32xbf16>, vector<32x32xbf16>, vector<2x32xf32> -> vector<2x32xf32>
    %c0_8 = arith.constant 0 : index
    %c0_9 = arith.constant 0 : index
    %10 = vector.load %arg5[%c0_8, %c0_9] : memref<1x32xf32, #tpu.memory_space<vmem>>, vector<1x32xf32>
    %11 = vector.broadcast %10 : vector<1x32xf32> to vector<2x32xf32>
    %12 = arith.addf %9, %11 : vector<2x32xf32>
    %13 = arith.truncf %12 : vector<2x32xf32> to vector<2x32xbf16>
    %c0_10 = arith.constant 0 : index
    %c0_11 = arith.constant 0 : index
    %14 = vector.load %arg6[%c0_10, %c0_11] : memref<32x128xbf16, #tpu.memory_space<vmem>>, vector<32x128xbf16>
    %cst_12 = arith.constant dense<0.000000e+00> : vector<2x128xf32>
    %15 = tpu.matmul %13, %14, %cst_12 {dimension_numbers = #tpu.dot_dimension_numbers<[1], [0], [0], [1], [0, 0, 1, 1], [], []>} : vector<2x32xbf16>, vector<32x128xbf16>, vector<2x128xf32> -> vector<2x128xf32>
    %c0_13 = arith.constant 0 : index
    %c0_14 = arith.constant 0 : index
    %16 = vector.load %arg7[%c0_13, %c0_14] : memref<1x128xf32, #tpu.memory_space<vmem>>, vector<1x128xf32>
    %17 = vector.broadcast %16 : vector<1x128xf32> to vector<2x128xf32>
    %18 = arith.addf %15, %17 : vector<2x128xf32>
    %19 = tpu.iota {dimensions = array<i32: 1>} : vector<2x128xi32>
    %c3_i32 = arith.constant 3 : i32
    %20 = vector.broadcast %c3_i32 : i32 to vector<2x128xi32>
    %21 = arith.cmpi slt, %19, %20 : vector<2x128xi32>
    %cst_15 = arith.constant -1.000000e+30 : f32
    %22 = vector.broadcast %cst_15 : f32 to vector<2x128xf32>
    %23 = arith.select %21, %18, %22 : vector<2x128xi1>, vector<2x128xf32>
    %cst_16 = arith.constant dense<0xFF800000> : vector<2xf32>
    %24 = vector.multi_reduction <maximumf>, %23, %cst_16 [1] : vector<2x128xf32> to vector<2xf32>
    %25 = vector.shape_cast %24 : vector<2xf32> to vector<2x1xf32>
    %26 = vector.broadcast %25 : vector<2x1xf32> to vector<2x128xf32>
    %27 = arith.subf %23, %26 : vector<2x128xf32>
    %28 = math.exp %27 : vector<2x128xf32>
    %cst_17 = arith.constant dense<0.000000e+00> : vector<2xf32>
    %29 = vector.multi_reduction <add>, %28, %cst_17 [1] : vector<2x128xf32> to vector<2xf32>
    %30 = vector.shape_cast %29 : vector<2xf32> to vector<2x1xf32>
    %31 = vector.broadcast %30 : vector<2x1xf32> to vector<2x128xf32>
    %32 = arith.divf %28, %31 : vector<2x128xf32>
    %c0_18 = arith.constant 0 : index
    %c0_19 = arith.constant 0 : index
    %33 = vector.load %arg8[%c0_18, %c0_19] : memref<2x128xf32, #tpu.memory_space<vmem>>, vector<2x128xf32>
    tpu.vector_store %arg8[%c0_18, %c0_19], %32 {strides = array<i32>} : memref<2x128xf32, #tpu.memory_space<vmem>>, vector<2x128xf32>,
    return
  }
  func.func @transform_0(%arg0: i32) -> (i32, i32) {
    %c0_i32 = arith.constant 0 : i32
    %c0_i32_0 = arith.constant 0 : i32
    %c0_i32_1 = arith.constant 0 : i32
    return %c0_i32, %c0_i32_0 : i32, i32
  }
  func.func @transform_1(%arg0: i32) -> (i32, i32) {
    %c0_i32 = arith.constant 0 : i32
    %c0_i32_0 = arith.constant 0 : i32
    %c0_i32_1 = arith.constant 0 : i32
    return %c0_i32, %c0_i32_0 : i32, i32
  }
  func.func @transform_2(%arg0: i32) -> (i32, i32) {
    %c0_i32 = arith.constant 0 : i32
    %c0_i32_0 = arith.constant 0 : i32
    %c0_i32_1 = arith.constant 0 : i32
    return %c0_i32, %c0_i32_0 : i32, i32
  }
  func.func @transform_3(%arg0: i32) -> (i32, i32) {
    %c0_i32 = arith.constant 0 : i32
    %c0_i32_0 = arith.constant 0 : i32
    %c0_i32_1 = arith.constant 0 : i32
    return %c0_i32, %c0_i32_0 : i32, i32
  }
  func.func @transform_4(%arg0: i32) -> (i32, i32) {
    %c0_i32 = arith.constant 0 : i32
    %c0_i32_0 = arith.constant 0 : i32
    %c0_i32_1 = arith.constant 0 : i32
    return %c0_i32, %c0_i32_0 : i32, i32
  }
  func.func @transform_5(%arg0: i32) -> (i32, i32) {
    %c0_i32 = arith.constant 0 : i32
    %c0_i32_0 = arith.constant 0 : i32
    %c0_i32_1 = arith.constant 0 : i32
    return %c0_i32, %c0_i32_0 : i32, i32
  }
  func.func @transform_6(%arg0: i32) -> (i32, i32) {
    %c0_i32 = arith.constant 0 : i32
    %c0_i32_0 = arith.constant 0 : i32
    %c0_i32_1 = arith.constant 0 : i32
    return %c0_i32, %c0_i32_0 : i32, i32
  }
  func.func @transform_7(%arg0: i32) -> (i32, i32) {
    %c0_i32 = arith.constant 0 : i32
    %c0_i32_0 = arith.constant 0 : i32
    %c0_i32_1 = arith.constant 0 : i32
    return %c0_i32, %c0_i32_0 : i32, i32
  }
}

</mosaic_0001>

<llo_original>
// kernel: bert_classifier_forward.10
$region0: #{bert_classifier_forward.10}
  #allocation0 [shape = 'u32[]', space=smem, size = 0x4, offset = 0x4, fixed_abs, tag = 'smem constant byte address 0x4 - core index']
  #allocation1 [shape = 'u32[144,128]{1,0:T(1,128)}', space=vmem, size = 0x12000, scoped, tag = 'internal scratch']
  %s0 = inlined_call_operand.vmem [shape: f32[16,32], index: 0, kind: input, shape index: {}]
  %s1 = inlined_call_operand.vmem [shape: f32[1,32], index: 1, kind: input, shape index: {}]
  %s2 = inlined_call_operand.vmem [shape: f32[1,32], index: 2, kind: input, shape index: {}]
  %s3 = inlined_call_operand.vmem [shape: bf16[16,32], index: 3, kind: output, shape index: {}]
  %s4 = sld [smem:[#allocation0]]
  $region22: #{bert_classifier_forward.10} parent=0
    _
  %s6 = ssub.s32 1, %s4
  %s7 = scalar_select 0, %s6, %s4
  // Predicated region
  $region2: #{bert_classifier_forward.10} parent=0 // pred_check
    _
  $region3: #{bert_classifier_forward.10} parent=0 // pred_check_branch
    %9 = sbr.rel (0) target = $region5
  $region4: #{bert_classifier_forward.10} parent=0 // pred_region
    _
  $region5: #{bert_classifier_forward.10} parent=0 // pred_fallthru
    _
  // Predicated region
  $region6: #{bert_classifier_forward.10} parent=0 // pred_check
    _
  $region7: #{bert_classifier_forward.10} parent=0 // pred_check_branch
    %11 = sbr.rel (0) target = $region9
  $region8: #{bert_classifier_forward.10} parent=0 // pred_region
    _
  $region9: #{bert_classifier_forward.10} parent=0 // pred_fallthru
    _
  // Predicated region
  $region10: #{bert_classifier_forward.10} parent=0 // pred_check
    _
  $region11: #{bert_classifier_forward.10} parent=0 // pred_check_branch
    %13 = sbr.rel (0) target = $region13
  $region12: #{bert_classifier_forward.10} parent=0 // pred_region
    _
  $region13: #{bert_classifier_forward.10} parent=0 // pred_fallthru
    _
  %v14 = vld [vmem:[%s0] sm:$0xff]
  %v15 = vld [vmem:[%s0 + $0x8] sm:$0xff]
  %vm16 = vcmask 261120
  %v17 = vsel %vm16, %v14, 0.0
  %18 = vadd.xlane.f32.xlu0 %v17
  %v19 = vpop.xlane.xlu0 %18
  %v20 = vsel %vm16, %v15, 0.0
  %21 = vadd.xlane.f32.xlu0 %v20
  %v22 = vpop.xlane.xlu0 %21
  %v23 = vrcp.pop 32.0
  %v24 = vmul.f32 %v19, %v23
  %v25 = vmul.f32 %v22, %v23
  %v26 = vsub.f32 %v14, %v24
  %v27 = vsub.f32 %v15, %v25
  %v28 = vmul.f32 %v26, %v26
  %v29 = vmul.f32 %v27, %v27
  %v30 = vsel %vm16, %v28, 0.0
  %31 = vadd.xlane.f32.xlu0 %v30
  %v32 = vpop.xlane.xlu0 %31
  %v33 = vsel %vm16, %v29, 0.0
  %34 = vadd.xlane.f32.xlu0 %v33
  %v35 = vpop.xlane.xlu0 %34
  %v36 = vmul.f32 %v32, %v23
  %v37 = vmul.f32 %v35, %v23
  %v38 = vadd.f32 %v36, 1e-12
  %v39 = vadd.f32 %v37, 1e-12
  %v40 = vrsqrt.pop %v38
  %v41 = vrsqrt.pop %v39
  %v42 = vmul.f32 %v26, %v40
  %v43 = vmul.f32 %v27, %v41
  %v44 = vld [vmem:[%s1] sm:$0x1]
  %v46 = vlaneseq
  %v47 = vshrl.u32 %v46, 7
  %v48 = vsub.s32 0, %v47
  %v49 = vrot.slane %v44, %v48
  %v51 = vmul.f32 %v42, %v49
  %v52 = vmul.f32 %v43, %v49
  %v53 = vld [vmem:[%s2] sm:$0x1]
  %v55 = vlaneseq
  %v56 = vshrl.u32 %v55, 7
  %v57 = vsub.s32 0, %v56
  %v58 = vrot.slane %v53, %v57
  %v60 = vadd.f32 %v51, %v58
  %v61 = vadd.f32 %v52, %v58
  %v62 = vpack.c.bf16 %v61, %v60
  %v64 = vunpack.c.l.b16 %v62
  %v65 = vunpack.c.h.b16 %v62
  %v66 = vpack.c.b16 %v64, %v64
  %v67 = vpack.c.b16 %v65, %v65
  %vm70 = vcmask 257024
  %71 = vst.msk [vmem:[%s3] sm:$0xf] %vm70, %v66
  %72 = vst.msk [vmem:[%s3 + $0x4] sm:$0xf] %vm70, %v67
  // Predicated region
  $region14: #{bert_classifier_forward.10} parent=0 // pred_check
    _
  $region15: #{bert_classifier_forward.10} parent=0 // pred_check_branch
    %74 = sbr.rel (0) target = $region17
  $region16: #{bert_classifier_forward.10} parent=0 // pred_region
    _
  $region17: #{bert_classifier_forward.10} parent=0 // pred_fallthru
    _
  // Predicated region
  $region18: #{bert_classifier_forward.10} parent=0 // pred_check
    _
  $region19: #{bert_classifier_forward.10} parent=0 // pred_check_branch
    %76 = sbr.rel (0) target = $region21
  $region20: #{bert_classifier_forward.10} parent=0 // pred_region
    _
  $region21: #{bert_classifier_forward.10} parent=0 // pred_fallthru
    _

// kernel: bert_classifier_forward.11
$region0: #{bert_classifier_forward.11}
  #allocation0 [shape = 'u32[]', space=smem, size = 0x4, offset = 0x4, fixed_abs, tag = 'smem constant byte address 0x4 - core index']
  #allocation1 [shape = 'u32[144,128]{1,0:T(1,128)}', space=vmem, size = 0x12000, scoped, tag = 'internal scratch']
  %s0 = inlined_call_operand.vmem [shape: bf16[16,32], index: 0, kind: input, shape index: {}]
  %s1 = inlined_call_operand.vmem [shape: bf16[32,96], index: 1, kind: input, shape index: {}]
  %s2 = inlined_call_operand.vmem [shape: f32[1,96], index: 2, kind: input, shape index: {}]
  %s3 = inlined_call_operand.vmem [shape: bf16[16,96], index: 3, kind: output, shape index: {}]
  %s4 = sld [smem:[#allocation0]]
  $region22: #{bert_classifier_forward.11} parent=0
    _
  %s6 = ssub.s32 1, %s4
  %s7 = scalar_select 0, %s6, %s4
  // Predicated region
  $region2: #{bert_classifier_forward.11} parent=0 // pred_check
    _
  $region3: #{bert_classifier_forward.11} parent=0 // pred_check_branch
    %9 = sbr.rel (0) target = $region5
  $region4: #{bert_classifier_forward.11} parent=0 // pred_region
    _
  $region5: #{bert_classifier_forward.11} parent=0 // pred_fallthru
    _
  // Predicated region
  $region6: #{bert_classifier_forward.11} parent=0 // pred_check
    _
  $region7: #{bert_classifier_forward.11} parent=0 // pred_check_branch
    %11 = sbr.rel (0) target = $region9
  $region8: #{bert_classifier_forward.11} parent=0 // pred_region
    _
  $region9: #{bert_classifier_forward.11} parent=0 // pred_fallthru
    _
  // Predicated region
  $region10: #{bert_classifier_forward.11} parent=0 // pred_check
    _
  $region11: #{bert_classifier_forward.11} parent=0 // pred_check_branch
    %13 = sbr.rel (0) target = $region13
  $region12: #{bert_classifier_forward.11} parent=0 // pred_region
    _
  $region13: #{bert_classifier_forward.11} parent=0 // pred_fallthru
    _
  %v15 = vld [vmem:[%s0] sm:$0xf]
  %v16 = vld [vmem:[%s0 + $0x4] sm:$0xf]
  %v17 = vld [vmem:[%s1] sm:$0xf]
  %v18 = vld [vmem:[%s1 + $0x4] sm:$0xf]
  %v19 = vld [vmem:[%s1 + $0x8] sm:$0xf]
  %v20 = vld [vmem:[%s1 + $0xc] sm:$0xf]
  %v21 = vld [vmem:[%s2] sm:$0x1]
  %v23 = vlaneseq
  %v24 = vshrl.u32 %v23, 7
  %v25 = vsub.s32 0, %v24
  %v26 = vrot.slane %v21, %v25
  %v30 = vunpack.c.l.b16 %v15
  %v31 = vunpack.c.l.b16 %v16
  %v32 = vpack.c.b16 %v31, %v30
  %v37 = vunpack.c.l.b16 %v17
  %v38 = vunpack.c.l.b16 %v18
  %v39 = vunpack.c.l.b16 %v19
  %v40 = vunpack.c.l.b16 %v20
  %v41 = vpack.c.b16 %v38, %v37
  %v42 = vpack.c.b16 %v40, %v39
  %vm45 = vcmask 261120
  %v47 = vsel %vm45, %v32, 0
  %49 = vmatprep.subr.bf16.mxu0 0
  %50 = vmatpush1.bf16.msra.mxu0 %v41
  %51 = vmatprep.subr.bf16.mxu0 0
  %52 = vmatpush1.bf16.msra.mxu0 %v42
  %53 = vmatprep.subr.bf16.mxu0 0
  %54 = vmatpush1.bf16.msra.mxu0 0
  %55 = vmatprep.subr.bf16.mxu0 0
  %56 = vmatpush1.bf16.msra.mxu0 0
  %57 = vmatprep.subr.bf16.mxu0 0
  %58 = vmatpush1.bf16.msra.mxu0 0
  %59 = vmatprep.subr.bf16.mxu0 0
  %60 = vmatpush1.bf16.msra.mxu0 0
  %61 = vmatprep.subr.bf16.mxu0 0
  %62 = vmatpush1.bf16.msra.mxu0 0
  %63 = vmatprep.subr.bf16.mxu0 0
  %64 = vmatpush1.bf16.msra.mxu0 0
  %65 = vmatprep.subr.bf16.mxu0 0
  %66 = vmatpush1.bf16.msra.mxu0 0
  %67 = vmatprep.subr.bf16.mxu0 0
  %68 = vmatpush1.bf16.msra.mxu0 0
  %69 = vmatprep.subr.bf16.mxu0 0
  %70 = vmatpush1.bf16.msra.mxu0 0
  %71 = vmatprep.subr.bf16.mxu0 0
  %72 = vmatpush1.bf16.msra.mxu0 0
  %73 = vmatprep.subr.bf16.mxu0 0
  %74 = vmatpush1.bf16.msra.mxu0 0
  %75 = vmatprep.subr.bf16.mxu0 0
  %76 = vmatpush1.bf16.msra.mxu0 0
  %77 = vmatprep.subr.bf16.mxu0 0
  %78 = vmatpush1.bf16.msra.mxu0 0
  %79 = vmatprep.subr.bf16.mxu0 0
  %80 = vmatpush1.bf16.msra.mxu0 0
  %81 = vmatprep.mubr.bf16.mxu0 0
  %82 = vmatmul.mubr.bf16.gmra.mrb[0].mxu0 %v47
  %v83 = vpop.f32.mrb[0].mxu0
  %v84 = vadd.f32 %v26, %v83
  %v85 = vpop.f32.mrb[0].mxu0
  %v86 = vpop.f32.mrb[0].mxu0
  %v87 = vadd.f32 %v26, %v86
  %v88 = vpop.f32.mrb[0].mxu0
  %89 = vdwg.mxu0
  %v90 = vpack.c.bf16 %v87, %v84
  %v92 = vunpack.c.l.b16 %v90
  %v93 = vunpack.c.h.b16 %v90
  %v94 = vpack.c.b16 %v92, %v92
  %v95 = vpack.c.b16 %v93, %v93
  %vm98 = vcmask 781312
  %99 = vst.msk [vmem:[%s3] sm:$0xf] %vm98, %v94
  %100 = vst.msk [vmem:[%s3 + $0x4] sm:$0xf] %vm98, %v95
  // Predicated region
  $region14: #{bert_classifier_forward.11} parent=0 // pred_check
    _
  $region15: #{bert_classifier_forward.11} parent=0 // pred_check_branch
    %102 = sbr.rel (0) target = $region17
  $region16: #{bert_classifier_forward.11} parent=0 // pred_region
    _
  $region17: #{bert_classifier_forward.11} parent=0 // pred_fallthru
    _
  // Predicated region
  $region18: #{bert_classifier_forward.11} parent=0 // pred_check
    _
  $region19: #{bert_classifier_forward.11} parent=0 // pred_check_branch
    %104 = sbr.rel (0) target = $region21
  $region20: #{bert_classifier_forward.11} parent=0 // pred_region
    _
  $region21: #{bert_classifier_forward.11} parent=0 // pred_fallthru
    _

// kernel: bert_classifier_forward.13
$region0: #{bert_classifier_forward.13}
  #allocation0 [shape = 'u32[]', space=smem, size = 0x4, offset = 0x4, fixed_abs, tag = 'smem constant byte address 0x4 - core index']
  #allocation1 [shape = 'u32[144,128]{1,0:T(1,128)}', space=vmem, size = 0x12000, scoped, tag = 'internal scratch']
  %s0 = inlined_call_operand.vmem [shape: bf16[16,32], index: 0, kind: input, shape index: {}]
  %s1 = inlined_call_operand.vmem [shape: bf16[16,32], index: 1, kind: input, shape index: {}]
  %s2 = inlined_call_operand.vmem [shape: bf16[32,32], index: 2, kind: input, shape index: {}]
  %s3 = inlined_call_operand.vmem [shape: f32[1,32], index: 3, kind: input, shape index: {}]
  %s4 = inlined_call_operand.vmem [shape: f32[1,32], index: 4, kind: input, shape index: {}]
  %s5 = inlined_call_operand.vmem [shape: f32[1,32], index: 5, kind: input, shape index: {}]
  %s6 = inlined_call_operand.vmem [shape: bf16[16,32], index: 6, kind: output, shape index: {}]
  %s7 = sld [smem:[#allocation0]]
  $region34: #{bert_classifier_forward.13} parent=0
    _
  %s9 = ssub.s32 1, %s7
  %s10 = scalar_select 0, %s9, %s7
  // Predicated region
  $region2: #{bert_classifier_forward.13} parent=0 // pred_check
    _
  $region3: #{bert_classifier_forward.13} parent=0 // pred_check_branch
    %12 = sbr.rel (0) target = $region5
  $region4: #{bert_classifier_forward.13} parent=0 // pred_region
    _
  $region5: #{bert_classifier_forward.13} parent=0 // pred_fallthru
    _
  // Predicated region
  $region6: #{bert_classifier_forward.13} parent=0 // pred_check
    _
  $region7: #{bert_classifier_forward.13} parent=0 // pred_check_branch
    %14 = sbr.rel (0) target = $region9
  $region8: #{bert_classifier_forward.13} parent=0 // pred_region
    _
  $region9: #{bert_classifier_forward.13} parent=0 // pred_fallthru
    _
  // Predicated region
  $region10: #{bert_classifier_forward.13} parent=0 // pred_check
    _
  $region11: #{bert_classifier_forward.13} parent=0 // pred_check_branch
    %16 = sbr.rel (0) target = $region13
  $region12: #{bert_classifier_forward.13} parent=0 // pred_region
    _
  $region13: #{bert_classifier_forward.13} parent=0 // pred_fallthru
    _
  // Predicated region
  $region14: #{bert_classifier_forward.13} parent=0 // pred_check
    _
  $region15: #{bert_classifier_forward.13} parent=0 // pred_check_branch
    %18 = sbr.rel (0) target = $region17
  $region16: #{bert_classifier_forward.13} parent=0 // pred_region
    _
  $region17: #{bert_classifier_forward.13} parent=0 // pred_fallthru
    _
  // Predicated region
  $region18: #{bert_classifier_forward.13} parent=0 // pred_check
    _
  $region19: #{bert_classifier_forward.13} parent=0 // pred_check_branch
    %20 = sbr.rel (0) target = $region21
  $region20: #{bert_classifier_forward.13} parent=0 // pred_region
    _
  $region21: #{bert_classifier_forward.13} parent=0 // pred_fallthru
    _
  // Predicated region
  $region22: #{bert_classifier_forward.13} parent=0 // pred_check
    _
  $region23: #{bert_classifier_forward.13} parent=0 // pred_check_branch
    %22 = sbr.rel (0) target = $region25
  $region24: #{bert_classifier_forward.13} parent=0 // pred_region
    _
  $region25: #{bert_classifier_forward.13} parent=0 // pred_fallthru
    _
  %v24 = vld [vmem:[%s0] sm:$0xf]
  %v25 = vld [vmem:[%s0 + $0x4] sm:$0xf]
  %v26 = vld [vmem:[%s2] sm:$0xf]
  %v27 = vld [vmem:[%s2 + $0x4] sm:$0xf]
  %v28 = vld [vmem:[%s2 + $0x8] sm:$0xf]
  %v29 = vld [vmem:[%s2 + $0xc] sm:$0xf]
  %v30 = vld [vmem:[%s3] sm:$0x1]
  %v32 = vlaneseq
  %v33 = vshrl.u32 %v32, 7
  %v34 = vsub.s32 0, %v33
  %v35 = vrot.slane %v30, %v34
  %v39 = vunpack.c.l.b16 %v24
  %v40 = vunpack.c.l.b16 %v25
  %v41 = vpack.c.b16 %v40, %v39
  %v46 = vunpack.c.l.b16 %v26
  %v47 = vunpack.c.l.b16 %v27
  %v48 = vunpack.c.l.b16 %v28
  %v49 = vunpack.c.l.b16 %v29
  %v50 = vpack.c.b16 %v47, %v46
  %v51 = vpack.c.b16 %v49, %v48
  %vm54 = vcmask 261120
  %v56 = vsel %vm54, %v41, 0
  %58 = vmatprep.subr.bf16.mxu0 0
  %59 = vmatpush1.bf16.msra.mxu0 %v50
  %60 = vmatprep.subr.bf16.mxu0 0
  %61 = vmatpush1.bf16.msra.mxu0 %v51
  %62 = vmatprep.subr.bf16.mxu0 0
  %63 = vmatpush1.bf16.msra.mxu0 0
  %64 = vmatprep.subr.bf16.mxu0 0
  %65 = vmatpush1.bf16.msra.mxu0 0
  %66 = vmatprep.subr.bf16.mxu0 0
  %67 = vmatpush1.bf16.msra.mxu0 0
  %68 = vmatprep.subr.bf16.mxu0 0
  %69 = vmatpush1.bf16.msra.mxu0 0
  %70 = vmatprep.subr.bf16.mxu0 0
  %71 = vmatpush1.bf16.msra.mxu0 0
  %72 = vmatprep.subr.bf16.mxu0 0
  %73 = vmatpush1.bf16.msra.mxu0 0
  %74 = vmatprep.subr.bf16.mxu0 0
  %75 = vmatpush1.bf16.msra.mxu0 0
  %76 = vmatprep.subr.bf16.mxu0 0
  %77 = vmatpush1.bf16.msra.mxu0 0
  %78 = vmatprep.subr.bf16.mxu0 0
  %79 = vmatpush1.bf16.msra.mxu0 0
  %80 = vmatprep.subr.bf16.mxu0 0
  %81 = vmatpush1.bf16.msra.mxu0 0
  %82 = vmatprep.subr.bf16.mxu0 0
  %83 = vmatpush1.bf16.msra.mxu0 0
  %84 = vmatprep.subr.bf16.mxu0 0
  %85 = vmatpush1.bf16.msra.mxu0 0
  %86 = vmatprep.subr.bf16.mxu0 0
  %87 = vmatpush1.bf16.msra.mxu0 0
  %88 = vmatprep.subr.bf16.mxu0 0
  %89 = vmatpush1.bf16.msra.mxu0 0
  %90 = vmatprep.mubr.bf16.mxu0 0
  %91 = vmatmul.mubr.bf16.gmra.mrb[0].mxu0 %v56
  %v92 = vpop.f32.mrb[0].mxu0
  %v93 = vadd.f32 %v35, %v92
  %v94 = vpop.f32.mrb[0].mxu0
  %v95 = vpop.f32.mrb[0].mxu0
  %v96 = vadd.f32 %v35, %v95
  %v97 = vpop.f32.mrb[0].mxu0
  %98 = vdwg.mxu0
  %v99 = vld [vmem:[%s1] sm:$0xf]
  %v100 = vld [vmem:[%s1 + $0x4] sm:$0xf]
  %v101 = vunpack.c.l.bf16 %v99
  %v102 = vunpack.c.l.bf16 %v100
  %v103 = vadd.f32 %v93, %v101
  %v104 = vadd.f32 %v96, %v102
  %v105 = vsel %vm54, %v103, 0.0
  %106 = vadd.xlane.f32.xlu0 %v105
  %v107 = vpop.xlane.xlu0 %106
  %v108 = vsel %vm54, %v104, 0.0
  %109 = vadd.xlane.f32.xlu0 %v108
  %v110 = vpop.xlane.xlu0 %109
  %v111 = vrcp.pop 32.0
  %v112 = vmul.f32 %v107, %v111
  %v113 = vmul.f32 %v110, %v111
  %v114 = vsub.f32 %v103, %v112
  %v115 = vsub.f32 %v104, %v113
  %v116 = vmul.f32 %v114, %v114
  %v117 = vmul.f32 %v115, %v115
  %v118 = vsel %vm54, %v116, 0.0
  %119 = vadd.xlane.f32.xlu0 %v118
  %v120 = vpop.xlane.xlu0 %119
  %v121 = vsel %vm54, %v117, 0.0
  %122 = vadd.xlane.f32.xlu0 %v121
  %v123 = vpop.xlane.xlu0 %122
  %v124 = vmul.f32 %v120, %v111
  %v125 = vmul.f32 %v123, %v111
  %v126 = vadd.f32 %v124, 1e-12
  %v127 = vadd.f32 %v125, 1e-12
  %v128 = vrsqrt.pop %v126
  %v129 = vrsqrt.pop %v127
  %v130 = vmul.f32 %v114, %v128
  %v131 = vmul.f32 %v115, %v129
  %v132 = vld [vmem:[%s4] sm:$0x1]
  %v134 = vlaneseq
  %v135 = vshrl.u32 %v134, 7
  %v136 = vsub.s32 0, %v135
  %v137 = vrot.slane %v132, %v136
  %v139 = vmul.f32 %v130, %v137
  %v140 = vmul.f32 %v131, %v137
  %v141 = vld [vmem:[%s5] sm:$0x1]
  %v143 = vlaneseq
  %v144 = vshrl.u32 %v143, 7
  %v145 = vsub.s32 0, %v144
  %v146 = vrot.slane %v141, %v145
  %v148 = vadd.f32 %v139, %v146
  %v149 = vadd.f32 %v140, %v146
  %v150 = vpack.c.bf16 %v149, %v148
  %v152 = vunpack.c.l.b16 %v150
  %v153 = vunpack.c.h.b16 %v150
  %v154 = vpack.c.b16 %v152, %v152
  %v155 = vpack.c.b16 %v153, %v153
  %vm158 = vcmask 257024
  %159 = vst.msk [vmem:[%s6] sm:$0xf] %vm158, %v154
  %160 = vst.msk [vmem:[%s6 + $0x4] sm:$0xf] %vm158, %v155
  // Predicated region
  $region26: #{bert_classifier_forward.13} parent=0 // pred_check
    _
  $region27: #{bert_classifier_forward.13} parent=0 // pred_check_branch
    %162 = sbr.rel (0) target = $region29
  $region28: #{bert_classifier_forward.13} parent=0 // pred_region
    _
  $region29: #{bert_classifier_forward.13} parent=0 // pred_fallthru
    _
  // Predicated region
  $region30: #{bert_classifier_forward.13} parent=0 // pred_check
    _
  $region31: #{bert_classifier_forward.13} parent=0 // pred_check_branch
    %164 = sbr.rel (0) target = $region33
  $region32: #{bert_classifier_forward.13} parent=0 // pred_region
    _
  $region33: #{bert_classifier_forward.13} parent=0 // pred_fallthru
    _

// kernel: bert_classifier_forward.12
$region0: #{bert_classifier_forward.12}
  #allocation0 [shape = 'u32[]', space=smem, size = 0x4, offset = 0x4, fixed_abs, tag = 'smem constant byte address 0x4 - core index']
  #allocation1 [shape = 'u32[144,128]{1,0:T(1,128)}', space=vmem, size = 0x12000, scoped, tag = 'internal scratch']
  %s0 = inlined_call_operand.vmem [shape: bf16[2,8,96], index: 0, kind: input, shape index: {}]
  %s1 = inlined_call_operand.vmem [shape: f32[2,1,8], index: 1, kind: input, shape index: {}]
  %s2 = inlined_call_operand.vmem [shape: bf16[2,8,32], index: 2, kind: output, shape index: {}]
  %s3 = sld [smem:[#allocation0]]
  $region41: #{bert_classifier_forward.12} parent=0
    _
  %s5 = ssub.s32 1, %s3
  %s6 = scalar_select 0, %s5, %s3
  loop: start=0, step=1, limit=4
  $region2: #{bert_classifier_forward.12} parent=0 // loop_pre_header
    _
  $region3: #{bert_classifier_forward.12} parent=0 // loop_header
    %s8 = sphi 0, %s12
    %p9 = scmp.ge.s32.totalorder %s8, 4
    %s18 = sphi 0, %s20
    %s21 = sphi 0, %s18
    %s22 = sphi 0, %s21
    %s38 = sphi 0, %s22
    %s44 = sphi 0, %s46
    %s47 = sphi 0, %s44
    %s48 = sphi 0, %s47
    %s64 = sphi 0, %s48
    %s70 = sphi 0, %s72
    %s73 = sphi 0, %s70
    %s74 = sphi 0, %s73
    %s90 = sphi 0, %s74
  $region4: #{bert_classifier_forward.12} parent=0 // loop_header_branch
    %11 = sbr.rel (%p9) target = $region8
  $region5: #{bert_classifier_forward.12} parent=0 // loop_body
    %s13 = ssub.s32 %s8, 1
    %s14 = ssub.s32 %s8, 2
    %s15 = sadd.s32 %s8, 1
    %s16 = ssub.s32 %s8, %s15
    %p17 = scmp.eq.s32.totalorder %s16, 0
    %s19 = sadd.s32 %s18, 1
    %s20 = scalar_select %p17, %s18, %s19
    %p23 = pneg %p17
    %p24 = scmp.eq.s32.totalorder %s8, 1
    %p25 = por %p23, %p24
    %p26 = scmp.ne.s32.totalorder %s18, %s21
    %p27 = scmp.eq.s32.totalorder %s8, 0
    %p28 = por %p26, %p27
    %p29 = scmp.ne.s32.totalorder %s18, %s21
    %p30 = scmp.eq.s32.totalorder %s13, 1
    %p31 = por %p29, %p30
    %p32 = scmp.ne.s32.totalorder %s21, %s22
    %p33 = scmp.eq.s32.totalorder %s13, 0
    %p34 = por %p32, %p33
    %p35 = scmp.ne.s32.totalorder %s21, %s22
    %p36 = scmp.eq.s32.totalorder %s14, 1
    %p37 = por %p35, %p36
    %p39 = scmp.ne.s32.totalorder %s22, %s38
    %p40 = scmp.eq.s32.totalorder %s14, 0
    %p41 = por %p39, %p40
    %s42 = ssub.s32 %s8, %s15
    %p43 = scmp.eq.s32.totalorder %s42, 0
    %s45 = sadd.s32 %s44, 1
    %s46 = scalar_select %p43, %s44, %s45
    %p49 = pneg %p43
    %p50 = scmp.eq.s32.totalorder %s8, 1
    %p51 = por %p49, %p50
    %p52 = scmp.ne.s32.totalorder %s44, %s47
    %p53 = scmp.eq.s32.totalorder %s8, 0
    %p54 = por %p52, %p53
    %p55 = scmp.ne.s32.totalorder %s44, %s47
    %p56 = scmp.eq.s32.totalorder %s13, 1
    %p57 = por %p55, %p56
    %p58 = scmp.ne.s32.totalorder %s47, %s48
    %p59 = scmp.eq.s32.totalorder %s13, 0
    %p60 = por %p58, %p59
    %p61 = scmp.ne.s32.totalorder %s47, %s48
    %p62 = scmp.eq.s32.totalorder %s14, 1
    %p63 = por %p61, %p62
    %p65 = scmp.ne.s32.totalorder %s48, %s64
    %p66 = scmp.eq.s32.totalorder %s14, 0
    %p67 = por %p65, %p66
    %s68 = ssub.s32 %s8, %s15
    %p69 = scmp.eq.s32.totalorder %s68, 0
    %s71 = sadd.s32 %s70, 1
    %s72 = scalar_select %p69, %s70, %s71
    %p75 = pneg %p69
    %p76 = scmp.eq.s32.totalorder %s8, 1
    %p77 = por %p75, %p76
    %p78 = scmp.ne.s32.totalorder %s70, %s73
    %p79 = scmp.eq.s32.totalorder %s8, 0
    %p80 = por %p78, %p79
    %p81 = scmp.ne.s32.totalorder %s70, %s73
    %p82 = scmp.eq.s32.totalorder %s13, 1
    %p83 = por %p81, %p82
    %p84 = scmp.ne.s32.totalorder %s73, %s74
    %p85 = scmp.eq.s32.totalorder %s13, 0
    %p86 = por %p84, %p85
    %p87 = scmp.ne.s32.totalorder %s73, %s74
    %p88 = scmp.eq.s32.totalorder %s14, 1
    %p89 = por %p87, %p88
    %p91 = scmp.ne.s32.totalorder %s74, %s90
    %p92 = scmp.eq.s32.totalorder %s14, 0
    %p93 = por %p91, %p92
    %p94 = scmp.le.s32.totalorder 1, %s8
    %p95 = scmp.lt.s32.totalorder %s8, 3
    %p96 = pnand %p94, %p95
    %p97 = pneg %p96
    // Predicated region
    $region9: #{bert_classifier_forward.12} parent=5 // pred_check
      _
    $region10: #{bert_classifier_forward.12} parent=5 // pred_check_branch
      %99 = sbr.rel (%p96) target = $region12
    $region11: #{bert_classifier_forward.12} parent=5 // pred_region
      %s100 = ssub.s32 %s8, 1
    $region12: #{bert_classifier_forward.12} parent=5 // pred_fallthru
      _
    %p101 = scmp.lt.s32.totalorder %s8, 2
    // Predicated region
    $region13: #{bert_classifier_forward.12} parent=5 // pred_check
      %p102 = pneg %p101
    $region14: #{bert_classifier_forward.12} parent=5 // pred_check_branch
      %104 = sbr.rel (%p102) target = $region16
    $region15: #{bert_classifier_forward.12} parent=5 // pred_region
      // Predicated region
      $region17: #{bert_classifier_forward.12} parent=15 // pred_check
        %p105 = pneg %p28
      $region18: #{bert_classifier_forward.12} parent=15 // pred_check_branch
        %107 = sbr.rel (%p105) target = $region20
      $region19: #{bert_classifier_forward.12} parent=15 // pred_region
        %p108 = scmp.lt.s32.totalorder %s8, 1
        %s109 = scalar_select %p108, %s8, 1
        %s110 = smul.addr %s109, 4
        %s111 = scalar_lea.vmem %s0, %s110
      $region20: #{bert_classifier_forward.12} parent=15 // pred_fallthru
        _
      // Predicated region
      $region21: #{bert_classifier_forward.12} parent=15 // pred_check
        %p112 = pneg %p54
      $region22: #{bert_classifier_forward.12} parent=15 // pred_check_branch
        %114 = sbr.rel (%p112) target = $region24
      $region23: #{bert_classifier_forward.12} parent=15 // pred_region
        %p115 = scmp.lt.s32.totalorder %s8, 1
        %s116 = scalar_select %p115, %s8, 1
        %s117 = scalar_lea.vmem %s1, %s116
      $region24: #{bert_classifier_forward.12} parent=15 // pred_fallthru
        _
    $region16: #{bert_classifier_forward.12} parent=5 // pred_fallthru
      _
    %p118 = scmp.le.s32.totalorder 1, %s8
    %p119 = scmp.lt.s32.totalorder %s8, 3
    %p120 = pnand %p118, %p119
    %p121 = pneg %p120
    // Predicated region
    $region25: #{bert_classifier_forward.12} parent=5 // pred_check
      _
    $region26: #{bert_classifier_forward.12} parent=5 // pred_check_branch
      %123 = sbr.rel (%p120) target = $region28
    $region27: #{bert_classifier_forward.12} parent=5 // pred_region
      %s124 = ssub.s32 %s8, 1
      %p125 = scmp.lt.s32.totalorder %s13, 1
      %s126 = scalar_select %p125, %s13, 1
      %s127 = smul.addr %s126, 4
      %s128 = scalar_lea.vmem %s0, %s127
      %p129 = pneg %p34
      %p130 = pneg %p31
      %p131 = scmp.lt.s32.totalorder %s13, 1
      %s132 = scalar_select %p131, %s13, 1
      %s133 = scalar_lea.vmem %s1, %s132
      %p134 = pneg %p60
      %p135 = pneg %p57
      %p136 = pneg %p86
      %p137 = pneg %p83
      %p138 = scmp.lt.s32.totalorder %s13, 1
      %s139 = scalar_select %p138, %s13, 1
      %s140 = smul.addr %s139, 4
      %s141 = scalar_lea.vmem %s2, %s140
      %p142 = scmp.lt.s32.totalorder %s13, 1
      %s143 = scalar_select %p142, %s13, 1
      %s144 = smul.addr %s143, 4
      %s145 = scalar_lea.vmem %s0, %s144
      %p146 = scmp.lt.s32.totalorder %s13, 1
      %s147 = scalar_select %p146, %s13, 1
      %s148 = scalar_lea.vmem %s1, %s147
      %p149 = scmp.lt.s32.totalorder %s13, 1
      %s150 = scalar_select %p149, %s13, 1
      %s151 = smul.addr %s150, 4
      %s152 = scalar_lea.vmem %s2, %s151
      %v154 = vld [vmem:[%s145] sm:$0xf]
      %v155 = vld [vmem:[%s148] sm:$0x1]
      %v157 = vunpack.c.l.b16 %v154
      %v158 = vpack.c.b16 %v157, %v157
      %159 = vrot.lane.b32.xlu0 %v158, 96
      %v160 = vpop.permute.xlu0 %159
      %vm161 = vcmask 130048
      %v163 = vsel %vm161, %v154, 0
      %v166 = vsel %vm161, %v160, 0
      %168 = vmatprep.subr.bf16.mxu0 0
      %169 = vmatpush1.bf16.xpose.msra.mxu0 %v166
      %170 = vmatprep.subr.bf16.mxu0 0
      %171 = vmatpush1.bf16.xpose.msra.mxu0 0
      %172 = vmatprep.subr.bf16.mxu0 0
      %173 = vmatpush1.bf16.xpose.msra.mxu0 0
      %174 = vmatprep.subr.bf16.mxu0 0
      %175 = vmatpush1.bf16.xpose.msra.mxu0 0
      %176 = vmatprep.subr.bf16.mxu0 0
      %177 = vmatpush1.bf16.xpose.msra.mxu0 0
      %178 = vmatprep.subr.bf16.mxu0 0
      %179 = vmatpush1.bf16.xpose.msra.mxu0 0
      %180 = vmatprep.subr.bf16.mxu0 0
      %181 = vmatpush1.bf16.xpose.msra.mxu0 0
      %182 = vmatprep.subr.bf16.mxu0 0
      %183 = vmatpush1.bf16.xpose.msra.mxu0 0
      %184 = vmatprep.subr.bf16.mxu0 0
      %185 = vmatpush1.bf16.xpose.msra.mxu0 0
      %186 = vmatprep.subr.bf16.mxu0 0
      %187 = vmatpush1.bf16.xpose.msra.mxu0 0
      %188 = vmatprep.subr.bf16.mxu0 0
      %189 = vmatpush1.bf16.xpose.msra.mxu0 0
      %190 = vmatprep.subr.bf16.mxu0 0
      %191 = vmatpush1.bf16.xpose.msra.mxu0 0
      %192 = vmatprep.subr.bf16.mxu0 0
      %193 = vmatpush1.bf16.xpose.msra.mxu0 0
      %194 = vmatprep.subr.bf16.mxu0 0
      %195 = vmatpush1.bf16.xpose.msra.mxu0 0
      %196 = vmatprep.subr.bf16.mxu0 0
      %197 = vmatpush1.bf16.xpose.msra.mxu0 0
      %198 = vmatprep.subr.bf16.mxu0 0
      %199 = vmatpush1.bf16.xpose.msra.mxu0 0
      %200 = vmatprep.mubr.bf16.mxu0 0
      %201 = vmatmul.mubr.bf16.gmra.mrb[0].mxu0 %v163
      %v202 = vpop.f32.mrb[0].mxu0
      %v203 = vadd.f32 0.0, %v202
      %v204 = vpop.f32.mrb[0].mxu0
      %v205 = vpop.f32.mrb[0].mxu0
      %v206 = vpop.f32.mrb[0].mxu0
      %207 = vdwg.mxu0
      %v208 = vmul.f32 %v203, 0.25
      %v210 = vlaneseq
      %v211 = vshrl.u32 %v210, 7
      %v212 = vsub.s32 0, %v211
      %v213 = vrot.slane %v155, %v212
      %v215 = vadd.f32 %v208, %v213
      %vm216 = vcmask 64512
      %v217 = vsel %vm216, %v215, -inf
      %218 = vmax.xlane.f32.xlu0 %v217
      %v219 = vpop.xlane.xlu0 %218
      %v220 = vsub.f32 %v215, %v219
      %v221 = vmul.f32 %v220, 1.442695
      %v222 = vpow.pop %v221
      %v223 = vsel %vm216, %v222, 0.0
      %224 = vadd.xlane.f32.xlu0 %v223
      %v225 = vpop.xlane.xlu0 %224
      %v226 = vrcp.pop %v225
      %v227 = vmul.f32 %v222, %v226
      %v228 = vpack.c.bf16 %v227, %v227
      %229 = vrot.lane.b32.xlu0 %v158, 64
      %v230 = vpop.permute.xlu0 %229
      %v232 = vsel %vm216, %v228, 0
      %vm234 = vcmask 1043456
      %v236 = vsel %vm234, %v230, 0
      %238 = vmatprep.subr.bf16.mxu0 0
      %239 = vmatpush1.bf16.msra.mxu0 %v236
      %240 = vmatprep.subr.bf16.mxu0 0
      %241 = vmatpush1.bf16.msra.mxu0 0
      %242 = vmatprep.subr.bf16.mxu0 0
      %243 = vmatpush1.bf16.msra.mxu0 0
      %244 = vmatprep.subr.bf16.mxu0 0
      %245 = vmatpush1.bf16.msra.mxu0 0
      %246 = vmatprep.subr.bf16.mxu0 0
      %247 = vmatpush1.bf16.msra.mxu0 0
      %248 = vmatprep.subr.bf16.mxu0 0
      %249 = vmatpush1.bf16.msra.mxu0 0
      %250 = vmatprep.subr.bf16.mxu0 0
      %251 = vmatpush1.bf16.msra.mxu0 0
      %252 = vmatprep.subr.bf16.mxu0 0
      %253 = vmatpush1.bf16.msra.mxu0 0
      %254 = vmatprep.subr.bf16.mxu0 0
      %255 = vmatpush1.bf16.msra.mxu0 0
      %256 = vmatprep.subr.bf16.mxu0 0
      %257 = vmatpush1.bf16.msra.mxu0 0
      %258 = vmatprep.subr.bf16.mxu0 0
      %259 = vmatpush1.bf16.msra.mxu0 0
      %260 = vmatprep.subr.bf16.mxu0 0
      %261 = vmatpush1.bf16.msra.mxu0 0
      %262 = vmatprep.subr.bf16.mxu0 0
      %263 = vmatpush1.bf16.msra.mxu0 0
      %264 = vmatprep.subr.bf16.mxu0 0
      %265 = vmatpush1.bf16.msra.mxu0 0
      %266 = vmatprep.subr.bf16.mxu0 0
      %267 = vmatpush1.bf16.msra.mxu0 0
      %268 = vmatprep.subr.bf16.mxu0 0
      %269 = vmatpush1.bf16.msra.mxu0 0
      %270 = vmatprep.mubr.bf16.mxu0 0
      %271 = vmatmul.mubr.bf16.gmra.mrb[0].mxu0 %v232
      %v272 = vpop.f32.mrb[0].mxu0
      %v273 = vadd.f32 0.0, %v272
      %v274 = vpop.f32.mrb[0].mxu0
      %v275 = vpop.f32.mrb[0].mxu0
      %v276 = vpop.f32.mrb[0].mxu0
      %277 = vdwg.mxu0
      %278 = vrot.lane.b32.xlu0 %v158, 112
      %v279 = vpop.permute.xlu0 %278
      %280 = vrot.lane.b32.xlu0 %v158, 80
      %v281 = vpop.permute.xlu0 %280
      %v283 = vsel %vm161, %v279, 0
      %v286 = vsel %vm161, %v281, 0
      %288 = vmatprep.subr.bf16.mxu0 0
      %289 = vmatpush1.bf16.xpose.msra.mxu0 %v286
      %290 = vmatprep.subr.bf16.mxu0 0
      %291 = vmatpush1.bf16.xpose.msra.mxu0 0
      %292 = vmatprep.subr.bf16.mxu0 0
      %293 = vmatpush1.bf16.xpose.msra.mxu0 0
      %294 = vmatprep.subr.bf16.mxu0 0
      %295 = vmatpush1.bf16.xpose.msra.mxu0 0
      %296 = vmatprep.subr.bf16.mxu0 0
      %297 = vmatpush1.bf16.xpose.msra.mxu0 0
      %298 = vmatprep.subr.bf16.mxu0 0
      %299 = vmatpush1.bf16.xpose.msra.mxu0 0
      %300 = vmatprep.subr.bf16.mxu0 0
      %301 = vmatpush1.bf16.xpose.msra.mxu0 0
      %302 = vmatprep.subr.bf16.mxu0 0
      %303 = vmatpush1.bf16.xpose.msra.mxu0 0
      %304 = vmatprep.subr.bf16.mxu0 0
      %305 = vmatpush1.bf16.xpose.msra.mxu0 0
      %306 = vmatprep.subr.bf16.mxu0 0
      %307 = vmatpush1.bf16.xpose.msra.mxu0 0
      %308 = vmatprep.subr.bf16.mxu0 0
      %309 = vmatpush1.bf16.xpose.msra.mxu0 0
      %310 = vmatprep.subr.bf16.mxu0 0
      %311 = vmatpush1.bf16.xpose.msra.mxu0 0
      %312 = vmatprep.subr.bf16.mxu0 0
      %313 = vmatpush1.bf16.xpose.msra.mxu0 0
      %314 = vmatprep.subr.bf16.mxu0 0
      %315 = vmatpush1.bf16.xpose.msra.mxu0 0
      %316 = vmatprep.subr.bf16.mxu0 0
      %317 = vmatpush1.bf16.xpose.msra.mxu0 0
      %318 = vmatprep.subr.bf16.mxu0 0
      %319 = vmatpush1.bf16.xpose.msra.mxu0 0
      %320 = vmatprep.mubr.bf16.mxu0 0
      %321 = vmatmul.mubr.bf16.gmra.mrb[0].mxu0 %v283
      %v322 = vpop.f32.mrb[0].mxu0
      %v323 = vadd.f32 0.0, %v322
      %v324 = vpop.f32.mrb[0].mxu0
      %v325 = vpop.f32.mrb[0].mxu0
      %v326 = vpop.f32.mrb[0].mxu0
      %327 = vdwg.mxu0
      %v328 = vmul.f32 %v323, 0.25
      %v329 = vadd.f32 %v328, %v213
      %v330 = vsel %vm216, %v329, -inf
      %331 = vmax.xlane.f32.xlu0 %v330
      %v332 = vpop.xlane.xlu0 %331
      %v333 = vsub.f32 %v329, %v332
      %v334 = vmul.f32 %v333, 1.442695
      %v335 = vpow.pop %v334
      %v336 = vsel %vm216, %v335, 0.0
      %337 = vadd.xlane.f32.xlu0 %v336
      %v338 = vpop.xlane.xlu0 %337
      %v339 = vrcp.pop %v338
      %v340 = vmul.f32 %v335, %v339
      %v341 = vpack.c.bf16 %v340, %v340
      %342 = vrot.lane.b32.xlu0 %v158, 48
      %v343 = vpop.permute.xlu0 %342
      %v345 = vsel %vm216, %v341, 0
      %v348 = vsel %vm234, %v343, 0
      %350 = vmatprep.subr.bf16.mxu0 0
      %351 = vmatpush1.bf16.msra.mxu0 %v348
      %352 = vmatprep.subr.bf16.mxu0 0
      %353 = vmatpush1.bf16.msra.mxu0 0
      %354 = vmatprep.subr.bf16.mxu0 0
      %355 = vmatpush1.bf16.msra.mxu0 0
      %356 = vmatprep.subr.bf16.mxu0 0
      %357 = vmatpush1.bf16.msra.mxu0 0
      %358 = vmatprep.subr.bf16.mxu0 0
      %359 = vmatpush1.bf16.msra.mxu0 0
      %360 = vmatprep.subr.bf16.mxu0 0
      %361 = vmatpush1.bf16.msra.mxu0 0
      %362 = vmatprep.subr.bf16.mxu0 0
      %363 = vmatpush1.bf16.msra.mxu0 0
      %364 = vmatprep.subr.bf16.mxu0 0
      %365 = vmatpush1.bf16.msra.mxu0 0
      %366 = vmatprep.subr.bf16.mxu0 0
      %367 = vmatpush1.bf16.msra.mxu0 0
      %368 = vmatprep.subr.bf16.mxu0 0
      %369 = vmatpush1.bf16.msra.mxu0 0
      %370 = vmatprep.subr.bf16.mxu0 0
      %371 = vmatpush1.bf16.msra.mxu0 0
      %372 = vmatprep.subr.bf16.mxu0 0
      %373 = vmatpush1.bf16.msra.mxu0 0
      %374 = vmatprep.subr.bf16.mxu0 0
      %375 = vmatpush1.bf16.msra.mxu0 0
      %376 = vmatprep.subr.bf16.mxu0 0
      %377 = vmatpush1.bf16.msra.mxu0 0
      %378 = vmatprep.subr.bf16.mxu0 0
      %379 = vmatpush1.bf16.msra.mxu0 0
      %380 = vmatprep.subr.bf16.mxu0 0
      %381 = vmatpush1.bf16.msra.mxu0 0
      %382 = vmatprep.mubr.bf16.mxu0 0
      %383 = vmatmul.mubr.bf16.gmra.mrb[0].mxu0 %v345
      %v384 = vpop.f32.mrb[0].mxu0
      %v385 = vadd.f32 0.0, %v384
      %v386 = vpop.f32.mrb[0].mxu0
      %v387 = vpop.f32.mrb[0].mxu0
      %v388 = vpop.f32.mrb[0].mxu0
      %389 = vdwg.mxu0
      %391 = vrot.lane.b32.xlu0 %v385, 16
      %v392 = vpop.permute.xlu0 %391
      %v394 = vsel %vm161, %v273, %v392
      %v395 = vpack.c.bf16 %v394, %v394
      %vm396 = vcmask 257024
      %397 = vst.msk [vmem:[%s152] sm:$0xf] %vm396, %v395
      %p398 = scmp.lt.s32.totalorder %s13, 1
      %s399 = scalar_select %p398, %s13, 1
      %s400 = smul.addr %s399, 4
      %s401 = scalar_lea.vmem %s2, %s400
      // Predicated region
      $region29: #{bert_classifier_forward.12} parent=27 // pred_check
        %p402 = pneg %p83
      $region30: #{bert_classifier_forward.12} parent=27 // pred_check_branch
        %404 = sbr.rel (%p402) target = $region32
      $region31: #{bert_classifier_forward.12} parent=27 // pred_region
        _
      $region32: #{bert_classifier_forward.12} parent=27 // pred_fallthru
        _
    $region28: #{bert_classifier_forward.12} parent=5 // pred_fallthru
      _
    %p405 = scmp.le.s32.totalorder 2, %s8
    // Predicated region
    $region33: #{bert_classifier_forward.12} parent=5 // pred_check
      %p406 = pneg %p405
    $region34: #{bert_classifier_forward.12} parent=5 // pred_check_branch
      %408 = sbr.rel (%p406) target = $region36
    $region35: #{bert_classifier_forward.12} parent=5 // pred_region
      %s409 = ssub.s32 %s8, 2
      // Predicated region
      $region37: #{bert_classifier_forward.12} parent=35 // pred_check
        %p410 = pneg %p89
      $region38: #{bert_classifier_forward.12} parent=35 // pred_check_branch
        %412 = sbr.rel (%p410) target = $region40
      $region39: #{bert_classifier_forward.12} parent=35 // pred_region
        %p413 = scmp.lt.s32.totalorder %s14, 1
        %s414 = scalar_select %p413, %s14, 1
        %s415 = smul.addr %s414, 4
        %s416 = scalar_lea.vmem %s2, %s415
      $region40: #{bert_classifier_forward.12} parent=35 // pred_fallthru
        _
    $region36: #{bert_classifier_forward.12} parent=5 // pred_fallthru
      _
  $region6: #{bert_classifier_forward.12} parent=0 // loop_footer
    %s12 = sadd.s32 1, %s8
  $region7: #{bert_classifier_forward.12} parent=0 // loop_footer_branch
    %7 = sbr.rel target = $region3
  $region8: #{bert_classifier_forward.12} parent=0 // loop_exit
    _

// kernel: bert_classifier_forward.14
$region0: #{bert_classifier_forward.14}
  #allocation0 [shape = 'u32[]', space=smem, size = 0x4, offset = 0x4, fixed_abs, tag = 'smem constant byte address 0x4 - core index']
  #allocation1 [shape = 'u32[144,128]{1,0:T(1,128)}', space=vmem, size = 0x12000, scoped, tag = 'internal scratch']
  %s0 = inlined_call_operand.vmem [shape: bf16[16,32], index: 0, kind: input, shape index: {}]
  %s1 = inlined_call_operand.vmem [shape: bf16[32,64], index: 1, kind: input, shape index: {}]
  %s2 = inlined_call_operand.vmem [shape: f32[1,64], index: 2, kind: input, shape index: {}]
  %s3 = inlined_call_operand.vmem [shape: bf16[64,32], index: 3, kind: input, shape index: {}]
  %s4 = inlined_call_operand.vmem [shape: f32[1,32], index: 4, kind: input, shape index: {}]
  %s5 = inlined_call_operand.vmem [shape: f32[1,32], index: 5, kind: input, shape index: {}]
  %s6 = inlined_call_operand.vmem [shape: f32[1,32], index: 6, kind: input, shape index: {}]
  %s7 = inlined_call_operand.vmem [shape: bf16[16,32], index: 7, kind: output, shape index: {}]
  %s8 = sld [smem:[#allocation0]]
  $region38: #{bert_classifier_forward.14} parent=0
    _
  %s10 = ssub.s32 1, %s8
  %s11 = scalar_select 0, %s10, %s8
  // Predicated region
  $region2: #{bert_classifier_forward.14} parent=0 // pred_check
    _
  $region3: #{bert_classifier_forward.14} parent=0 // pred_check_branch
    %13 = sbr.rel (0) target = $region5
  $region4: #{bert_classifier_forward.14} parent=0 // pred_region
    _
  $region5: #{bert_classifier_forward.14} parent=0 // pred_fallthru
    _
  // Predicated region
  $region6: #{bert_classifier_forward.14} parent=0 // pred_check
    _
  $region7: #{bert_classifier_forward.14} parent=0 // pred_check_branch
    %15 = sbr.rel (0) target = $region9
  $region8: #{bert_classifier_forward.14} parent=0 // pred_region
    _
  $region9: #{bert_classifier_forward.14} parent=0 // pred_fallthru
    _
  // Predicated region
  $region10: #{bert_classifier_forward.14} parent=0 // pred_check
    _
  $region11: #{bert_classifier_forward.14} parent=0 // pred_check_branch
    %17 = sbr.rel (0) target = $region13
  $region12: #{bert_classifier_forward.14} parent=0 // pred_region
    _
  $region13: #{bert_classifier_forward.14} parent=0 // pred_fallthru
    _
  // Predicated region
  $region14: #{bert_classifier_forward.14} parent=0 // pred_check
    _
  $region15: #{bert_classifier_forward.14} parent=0 // pred_check_branch
    %19 = sbr.rel (0) target = $region17
  $region16: #{bert_classifier_forward.14} parent=0 // pred_region
    _
  $region17: #{bert_classifier_forward.14} parent=0 // pred_fallthru
    _
  // Predicated region
  $region18: #{bert_classifier_forward.14} parent=0 // pred_check
    _
  $region19: #{bert_classifier_forward.14} parent=0 // pred_check_branch
    %21 = sbr.rel (0) target = $region21
  $region20: #{bert_classifier_forward.14} parent=0 // pred_region
    _
  $region21: #{bert_classifier_forward.14} parent=0 // pred_fallthru
    _
  // Predicated region
  $region22: #{bert_classifier_forward.14} parent=0 // pred_check
    _
  $region23: #{bert_classifier_forward.14} parent=0 // pred_check_branch
    %23 = sbr.rel (0) target = $region25
  $region24: #{bert_classifier_forward.14} parent=0 // pred_region
    _
  $region25: #{bert_classifier_forward.14} parent=0 // pred_fallthru
    _
  // Predicated region
  $region26: #{bert_classifier_forward.14} parent=0 // pred_check
    _
  $region27: #{bert_classifier_forward.14} parent=0 // pred_check_branch
    %25 = sbr.rel (0) target = $region29
  $region28: #{bert_classifier_forward.14} parent=0 // pred_region
    _
  $region29: #{bert_classifier_forward.14} parent=0 // pred_fallthru
    _
  %v27 = vld [vmem:[%s0] sm:$0xf]
  %v28 = vld [vmem:[%s0 + $0x4] sm:$0xf]
  %v29 = vld [vmem:[%s1] sm:$0xf]
  %v30 = vld [vmem:[%s1 + $0x4] sm:$0xf]
  %v31 = vld [vmem:[%s1 + $0x8] sm:$0xf]
  %v32 = vld [vmem:[%s1 + $0xc] sm:$0xf]
  %v33 = vld [vmem:[%s2] sm:$0x1]
  %v35 = vlaneseq
  %v36 = vshrl.u32 %v35, 7
  %v37 = vsub.s32 0, %v36
  %v38 = vrot.slane %v33, %v37
  %v42 = vunpack.c.l.b16 %v27
  %v43 = vunpack.c.l.b16 %v28
  %v44 = vpack.c.b16 %v43, %v42
  %v49 = vunpack.c.l.b16 %v29
  %v50 = vunpack.c.l.b16 %v30
  %v51 = vunpack.c.l.b16 %v31
  %v52 = vunpack.c.l.b16 %v32
  %v53 = vpack.c.b16 %v50, %v49
  %v54 = vpack.c.b16 %v52, %v51
  %vm57 = vcmask 261120
  %v59 = vsel %vm57, %v44, 0
  %61 = vmatprep.subr.bf16.mxu0 0
  %62 = vmatpush1.bf16.msra.mxu0 %v53
  %63 = vmatprep.subr.bf16.mxu0 0
  %64 = vmatpush1.bf16.msra.mxu0 %v54
  %65 = vmatprep.subr.bf16.mxu0 0
  %66 = vmatpush1.bf16.msra.mxu0 0
  %67 = vmatprep.subr.bf16.mxu0 0
  %68 = vmatpush1.bf16.msra.mxu0 0
  %69 = vmatprep.subr.bf16.mxu0 0
  %70 = vmatpush1.bf16.msra.mxu0 0
  %71 = vmatprep.subr.bf16.mxu0 0
  %72 = vmatpush1.bf16.msra.mxu0 0
  %73 = vmatprep.subr.bf16.mxu0 0
  %74 = vmatpush1.bf16.msra.mxu0 0
  %75 = vmatprep.subr.bf16.mxu0 0
  %76 = vmatpush1.bf16.msra.mxu0 0
  %77 = vmatprep.subr.bf16.mxu0 0
  %78 = vmatpush1.bf16.msra.mxu0 0
  %79 = vmatprep.subr.bf16.mxu0 0
  %80 = vmatpush1.bf16.msra.mxu0 0
  %81 = vmatprep.subr.bf16.mxu0 0
  %82 = vmatpush1.bf16.msra.mxu0 0
  %83 = vmatprep.subr.bf16.mxu0 0
  %84 = vmatpush1.bf16.msra.mxu0 0
  %85 = vmatprep.subr.bf16.mxu0 0
  %86 = vmatpush1.bf16.msra.mxu0 0
  %87 = vmatprep.subr.bf16.mxu0 0
  %88 = vmatpush1.bf16.msra.mxu0 0
  %89 = vmatprep.subr.bf16.mxu0 0
  %90 = vmatpush1.bf16.msra.mxu0 0
  %91 = vmatprep.subr.bf16.mxu0 0
  %92 = vmatpush1.bf16.msra.mxu0 0
  %93 = vmatprep.mubr.bf16.mxu0 0
  %94 = vmatmul.mubr.bf16.gmra.mrb[0].mxu0 %v59
  %v95 = vpop.f32.mrb[0].mxu0
  %v96 = vadd.f32 %v38, %v95
  %v97 = vpop.f32.mrb[0].mxu0
  %v98 = vpop.f32.mrb[0].mxu0
  %v99 = vadd.f32 %v38, %v98
  %v100 = vpop.f32.mrb[0].mxu0
  %101 = vdwg.mxu0
  %v102 = vmul.f32 %v96, 0.5
  %v103 = vmul.f32 %v99, 0.5
  %v104 = vmul.f32 %v96, 0.044715
  %v105 = vmul.f32 %v99, 0.044715
  %v106 = vmul.f32 %v104, %v96
  %v107 = vmul.f32 %v105, %v99
  %v108 = vmul.f32 %v106, %v96
  %v109 = vmul.f32 %v107, %v99
  %v110 = vadd.f32 %v96, %v108
  %v111 = vadd.f32 %v99, %v109
  %v112 = vmul.f32 %v110, 0.7978846
  %v113 = vmul.f32 %v111, 0.7978846
  %v114 = vtanh.pop %v112
  %v115 = vtanh.pop %v113
  %v116 = vadd.f32 %v114, 1.0
  %v117 = vadd.f32 %v115, 1.0
  %v118 = vmul.f32 %v102, %v116
  %v119 = vmul.f32 %v103, %v117
  %v120 = vpack.c.bf16 %v119, %v118
  %v121 = vld [vmem:[%s3] sm:$0xf]
  %v122 = vld [vmem:[%s3 + $0x4] sm:$0xf]
  %v123 = vld [vmem:[%s3 + $0x8] sm:$0xf]
  %v124 = vld [vmem:[%s3 + $0xc] sm:$0xf]
  %v125 = vld [vmem:[%s3 + $0x10] sm:$0xf]
  %v126 = vld [vmem:[%s3 + $0x14] sm:$0xf]
  %v127 = vld [vmem:[%s3 + $0x18] sm:$0xf]
  %v128 = vld [vmem:[%s3 + $0x1c] sm:$0xf]
  %v129 = vld [vmem:[%s4] sm:$0x1]
  %v131 = vlaneseq
  %v132 = vshrl.u32 %v131, 7
  %v133 = vsub.s32 0, %v132
  %v134 = vrot.slane %v129, %v133
  %v144 = vunpack.c.l.b16 %v121
  %v145 = vunpack.c.l.b16 %v122
  %v146 = vunpack.c.l.b16 %v123
  %v147 = vunpack.c.l.b16 %v124
  %v148 = vunpack.c.l.b16 %v125
  %v149 = vunpack.c.l.b16 %v126
  %v150 = vunpack.c.l.b16 %v127
  %v151 = vunpack.c.l.b16 %v128
  %v152 = vpack.c.b16 %v145, %v144
  %v153 = vpack.c.b16 %v147, %v146
  %v154 = vpack.c.b16 %v149, %v148
  %v155 = vpack.c.b16 %v151, %v150
  %vm160 = vcmask 523264
  %v162 = vsel %vm160, %v120, 0
  %164 = vmatprep.subr.bf16.mxu0 0
  %165 = vmatpush1.bf16.msra.mxu0 %v152
  %166 = vmatprep.subr.bf16.mxu0 0
  %167 = vmatpush1.bf16.msra.mxu0 %v153
  %168 = vmatprep.subr.bf16.mxu0 0
  %169 = vmatpush1.bf16.msra.mxu0 %v154
  %170 = vmatprep.subr.bf16.mxu0 0
  %171 = vmatpush1.bf16.msra.mxu0 %v155
  %172 = vmatprep.subr.bf16.mxu0 0
  %173 = vmatpush1.bf16.msra.mxu0 0
  %174 = vmatprep.subr.bf16.mxu0 0
  %175 = vmatpush1.bf16.msra.mxu0 0
  %176 = vmatprep.subr.bf16.mxu0 0
  %177 = vmatpush1.bf16.msra.mxu0 0
  %178 = vmatprep.subr.bf16.mxu0 0
  %179 = vmatpush1.bf16.msra.mxu0 0
  %180 = vmatprep.subr.bf16.mxu0 0
  %181 = vmatpush1.bf16.msra.mxu0 0
  %182 = vmatprep.subr.bf16.mxu0 0
  %183 = vmatpush1.bf16.msra.mxu0 0
  %184 = vmatprep.subr.bf16.mxu0 0
  %185 = vmatpush1.bf16.msra.mxu0 0
  %186 = vmatprep.subr.bf16.mxu0 0
  %187 = vmatpush1.bf16.msra.mxu0 0
  %188 = vmatprep.subr.bf16.mxu0 0
  %189 = vmatpush1.bf16.msra.mxu0 0
  %190 = vmatprep.subr.bf16.mxu0 0
  %191 = vmatpush1.bf16.msra.mxu0 0
  %192 = vmatprep.subr.bf16.mxu0 0
  %193 = vmatpush1.bf16.msra.mxu0 0
  %194 = vmatprep.subr.bf16.mxu0 0
  %195 = vmatpush1.bf16.msra.mxu0 0
  %196 = vmatprep.mubr.bf16.mxu0 0
  %197 = vmatmul.mubr.bf16.gmra.mrb[0].mxu0 %v162
  %v198 = vpop.f32.mrb[0].mxu0
  %v199 = vadd.f32 %v134, %v198
  %v200 = vpop.f32.mrb[0].mxu0
  %v201 = vpop.f32.mrb[0].mxu0
  %v202 = vadd.f32 %v134, %v201
  %v203 = vpop.f32.mrb[0].mxu0
  %204 = vdwg.mxu0
  %v205 = vunpack.c.l.bf16 %v27
  %v206 = vunpack.c.l.bf16 %v28
  %v207 = vadd.f32 %v199, %v205
  %v208 = vadd.f32 %v202, %v206
  %v209 = vsel %vm57, %v207, 0.0
  %210 = vadd.xlane.f32.xlu0 %v209
  %v211 = vpop.xlane.xlu0 %210
  %v212 = vsel %vm57, %v208, 0.0
  %213 = vadd.xlane.f32.xlu0 %v212
  %v214 = vpop.xlane.xlu0 %213
  %v215 = vrcp.pop 32.0
  %v216 = vmul.f32 %v211, %v215
  %v217 = vmul.f32 %v214, %v215
  %v218 = vsub.f32 %v207, %v216
  %v219 = vsub.f32 %v208, %v217
  %v220 = vmul.f32 %v218, %v218
  %v221 = vmul.f32 %v219, %v219
  %v222 = vsel %vm57, %v220, 0.0
  %223 = vadd.xlane.f32.xlu0 %v222
  %v224 = vpop.xlane.xlu0 %223
  %v225 = vsel %vm57, %v221, 0.0
  %226 = vadd.xlane.f32.xlu0 %v225
  %v227 = vpop.xlane.xlu0 %226
  %v228 = vmul.f32 %v224, %v215
  %v229 = vmul.f32 %v227, %v215
  %v230 = vadd.f32 %v228, 1e-12
  %v231 = vadd.f32 %v229, 1e-12
  %v232 = vrsqrt.pop %v230
  %v233 = vrsqrt.pop %v231
  %v234 = vmul.f32 %v218, %v232
  %v235 = vmul.f32 %v219, %v233
  %v236 = vld [vmem:[%s5] sm:$0x1]
  %v238 = vlaneseq
  %v239 = vshrl.u32 %v238, 7
  %v240 = vsub.s32 0, %v239
  %v241 = vrot.slane %v236, %v240
  %v243 = vmul.f32 %v234, %v241
  %v244 = vmul.f32 %v235, %v241
  %v245 = vld [vmem:[%s6] sm:$0x1]
  %v247 = vlaneseq
  %v248 = vshrl.u32 %v247, 7
  %v249 = vsub.s32 0, %v248
  %v250 = vrot.slane %v245, %v249
  %v252 = vadd.f32 %v243, %v250
  %v253 = vadd.f32 %v244, %v250
  %v254 = vpack.c.bf16 %v253, %v252
  %v256 = vunpack.c.l.b16 %v254
  %v257 = vunpack.c.h.b16 %v254
  %v258 = vpack.c.b16 %v256, %v256
  %v259 = vpack.c.b16 %v257, %v257
  %vm262 = vcmask 257024
  %263 = vst.msk [vmem:[%s7] sm:$0xf] %vm262, %v258
  %264 = vst.msk [vmem:[%s7 + $0x4] sm:$0xf] %vm262, %v259
  // Predicated region
  $region30: #{bert_classifier_forward.14} parent=0 // pred_check
    _
  $region31: #{bert_classifier_forward.14} parent=0 // pred_check_branch
    %266 = sbr.rel (0) target = $region33
  $region32: #{bert_classifier_forward.14} parent=0 // pred_region
    _
  $region33: #{bert_classifier_forward.14} parent=0 // pred_fallthru
    _
  // Predicated region
  $region34: #{bert_classifier_forward.14} parent=0 // pred_check
    _
  $region35: #{bert_classifier_forward.14} parent=0 // pred_check_branch
    %268 = sbr.rel (0) target = $region37
  $region36: #{bert_classifier_forward.14} parent=0 // pred_region
    _
  $region37: #{bert_classifier_forward.14} parent=0 // pred_fallthru
    _

// kernel: bert_classifier_forward.19
$region0: #{bert_classifier_forward.19}
  #allocation0 [shape = 'u32[]', space=smem, size = 0x4, offset = 0x4, fixed_abs, tag = 'smem constant byte address 0x4 - core index']
  #allocation1 [shape = 'u32[144,128]{1,0:T(1,128)}', space=vmem, size = 0x12000, scoped, tag = 'internal scratch']
  %s0 = inlined_call_operand.vmem [shape: bf16[2,32], index: 0, kind: input, shape index: {}]
  %s1 = inlined_call_operand.vmem [shape: bf16[32,32], index: 1, kind: input, shape index: {}]
  %s2 = inlined_call_operand.vmem [shape: f32[1,32], index: 2, kind: input, shape index: {}]
  %s3 = inlined_call_operand.vmem [shape: bf16[32,32], index: 3, kind: input, shape index: {}]
  %s4 = inlined_call_operand.vmem [shape: f32[1,32], index: 4, kind: input, shape index: {}]
  %s5 = inlined_call_operand.vmem [shape: bf16[32,128], index: 5, kind: input, shape index: {}]
  %s6 = inlined_call_operand.vmem [shape: f32[1,128], index: 6, kind: input, shape index: {}]
  %s7 = inlined_call_operand.hbm [shape: f32[2,128], index: 7, kind: output, shape index: {}]
  %s8 = sld [smem:[#allocation0]]
  $region38: #{bert_classifier_forward.19} parent=0
    _
  %s10 = ssub.s32 1, %s8
  %s11 = scalar_select 0, %s10, %s8
  $region1: #{bert_classifier_forward.19} parent=0
    #allocation2 [shape = 'u8[1024]{0}', space=vmem, size = 0x400, scoped, tag = 'output window, operand 0, single buffered']
    #allocation3 [shape = 's32[1]{0}', space=sflag, size = 0x4, scoped, tag = 'scoped memory for bert_classifier_forward.19']
    %12 = vsyncpa [#allocation3], 0
    // Predicated region
    $region2: #{bert_classifier_forward.19} parent=1 // pred_check
      _
    $region3: #{bert_classifier_forward.19} parent=1 // pred_check_branch
      %14 = sbr.rel (0) target = $region5
    $region4: #{bert_classifier_forward.19} parent=1 // pred_region
      _
    $region5: #{bert_classifier_forward.19} parent=1 // pred_fallthru
      _
    // Predicated region
    $region6: #{bert_classifier_forward.19} parent=1 // pred_check
      _
    $region7: #{bert_classifier_forward.19} parent=1 // pred_check_branch
      %16 = sbr.rel (0) target = $region9
    $region8: #{bert_classifier_forward.19} parent=1 // pred_region
      _
    $region9: #{bert_classifier_forward.19} parent=1 // pred_fallthru
      _
    // Predicated region
    $region10: #{bert_classifier_forward.19} parent=1 // pred_check
      _
    $region11: #{bert_classifier_forward.19} parent=1 // pred_check_branch
      %18 = sbr.rel (0) target = $region13
    $region12: #{bert_classifier_forward.19} parent=1 // pred_region
      _
    $region13: #{bert_classifier_forward.19} parent=1 // pred_fallthru
      _
    // Predicated region
    $region14: #{bert_classifier_forward.19} parent=1 // pred_check
      _
    $region15: #{bert_classifier_forward.19} parent=1 // pred_check_branch
      %20 = sbr.rel (0) target = $region17
    $region16: #{bert_classifier_forward.19} parent=1 // pred_region
      _
    $region17: #{bert_classifier_forward.19} parent=1 // pred_fallthru
      _
    // Predicated region
    $region18: #{bert_classifier_forward.19} parent=1 // pred_check
      _
    $region19: #{bert_classifier_forward.19} parent=1 // pred_check_branch
      %22 = sbr.rel (0) target = $region21
    $region20: #{bert_classifier_forward.19} parent=1 // pred_region
      _
    $region21: #{bert_classifier_forward.19} parent=1 // pred_fallthru
      _
    // Predicated region
    $region22: #{bert_classifier_forward.19} parent=1 // pred_check
      _
    $region23: #{bert_classifier_forward.19} parent=1 // pred_check_branch
      %24 = sbr.rel (0) target = $region25
    $region24: #{bert_classifier_forward.19} parent=1 // pred_region
      _
    $region25: #{bert_classifier_forward.19} parent=1 // pred_fallthru
      _
    // Predicated region
    $region26: #{bert_classifier_forward.19} parent=1 // pred_check
      _
    $region27: #{bert_classifier_forward.19} parent=1 // pred_check_branch
      %26 = sbr.rel (0) target = $region29
    $region28: #{bert_classifier_forward.19} parent=1 // pred_region
      _
    $region29: #{bert_classifier_forward.19} parent=1 // pred_fallthru
      _
    %v28 = vld [vmem:[%s0] sm:$0x1]
    %v29 = vld [vmem:[%s1] sm:$0xf]
    %v30 = vld [vmem:[%s1 + $0x4] sm:$0xf]
    %v31 = vld [vmem:[%s1 + $0x8] sm:$0xf]
    %v32 = vld [vmem:[%s1 + $0xc] sm:$0xf]
    %v33 = vld [vmem:[%s2] sm:$0x1]
    %v35 = vlaneseq
    %v36 = vshrl.u32 %v35, 7
    %v37 = vsub.s32 0, %v36
    %v38 = vrot.slane %v33, %v37
    %v44 = vunpack.c.l.b16 %v29
    %v45 = vunpack.c.l.b16 %v30
    %v46 = vunpack.c.l.b16 %v31
    %v47 = vunpack.c.l.b16 %v32
    %v48 = vpack.c.b16 %v45, %v44
    %v49 = vpack.c.b16 %v47, %v46
    %vm52 = vcmask 261120
    %v54 = vsel %vm52, %v28, 0
    %56 = vmatprep.subr.bf16.mxu0 0
    %57 = vmatpush1.bf16.msra.mxu0 %v48
    %58 = vmatprep.subr.bf16.mxu0 0
    %59 = vmatpush1.bf16.msra.mxu0 %v49
    %60 = vmatprep.subr.bf16.mxu0 0
    %61 = vmatpush1.bf16.msra.mxu0 0
    %62 = vmatprep.subr.bf16.mxu0 0
    %63 = vmatpush1.bf16.msra.mxu0 0
    %64 = vmatprep.subr.bf16.mxu0 0
    %65 = vmatpush1.bf16.msra.mxu0 0
    %66 = vmatprep.subr.bf16.mxu0 0
    %67 = vmatpush1.bf16.msra.mxu0 0
    %68 = vmatprep.subr.bf16.mxu0 0
    %69 = vmatpush1.bf16.msra.mxu0 0
    %70 = vmatprep.subr.bf16.mxu0 0
    %71 = vmatpush1.bf16.msra.mxu0 0
    %72 = vmatprep.subr.bf16.mxu0 0
    %73 = vmatpush1.bf16.msra.mxu0 0
    %74 = vmatprep.subr.bf16.mxu0 0
    %75 = vmatpush1.bf16.msra.mxu0 0
    %76 = vmatprep.subr.bf16.mxu0 0
    %77 = vmatpush1.bf16.msra.mxu0 0
    %78 = vmatprep.subr.bf16.mxu0 0
    %79 = vmatpush1.bf16.msra.mxu0 0
    %80 = vmatprep.subr.bf16.mxu0 0
    %81 = vmatpush1.bf16.msra.mxu0 0
    %82 = vmatprep.subr.bf16.mxu0 0
    %83 = vmatpush1.bf16.msra.mxu0 0
    %84 = vmatprep.subr.bf16.mxu0 0
    %85 = vmatpush1.bf16.msra.mxu0 0
    %86 = vmatprep.subr.bf16.mxu0 0
    %87 = vmatpush1.bf16.msra.mxu0 0
    %88 = vmatprep.mubr.bf16.mxu0 0
    %89 = vmatmul.mubr.bf16.gmra.mrb[0].mxu0 %v54
    %v90 = vpop.f32.mrb[0].mxu0
    %v91 = vadd.f32 %v38, %v90
    %v92 = vpop.f32.mrb[0].mxu0
    %v93 = vpop.f32.mrb[0].mxu0
    %v94 = vpop.f32.mrb[0].mxu0
    %95 = vdwg.mxu0
    %v96 = vtanh.pop %v91
    %v97 = vpack.c.bf16 %v96, %v96
    %v98 = vld [vmem:[%s3] sm:$0xf]
    %v99 = vld [vmem:[%s3 + $0x4] sm:$0xf]
    %v100 = vld [vmem:[%s3 + $0x8] sm:$0xf]
    %v101 = vld [vmem:[%s3 + $0xc] sm:$0xf]
    %v102 = vld [vmem:[%s4] sm:$0x1]
    %v104 = vlaneseq
    %v105 = vshrl.u32 %v104, 7
    %v106 = vsub.s32 0, %v105
    %v107 = vrot.slane %v102, %v106
    %v113 = vunpack.c.l.b16 %v98
    %v114 = vunpack.c.l.b16 %v99
    %v115 = vunpack.c.l.b16 %v100
    %v116 = vunpack.c.l.b16 %v101
    %v117 = vpack.c.b16 %v114, %v113
    %v118 = vpack.c.b16 %v116, %v115
    %v122 = vsel %vm52, %v97, 0
    %124 = vmatprep.subr.bf16.mxu0 0
    %125 = vmatpush1.bf16.msra.mxu0 %v117
    %126 = vmatprep.subr.bf16.mxu0 0
    %127 = vmatpush1.bf16.msra.mxu0 %v118
    %128 = vmatprep.subr.bf16.mxu0 0
    %129 = vmatpush1.bf16.msra.mxu0 0
    %130 = vmatprep.subr.bf16.mxu0 0
    %131 = vmatpush1.bf16.msra.mxu0 0
    %132 = vmatprep.subr.bf16.mxu0 0
    %133 = vmatpush1.bf16.msra.mxu0 0
    %134 = vmatprep.subr.bf16.mxu0 0
    %135 = vmatpush1.bf16.msra.mxu0 0
    %136 = vmatprep.subr.bf16.mxu0 0
    %137 = vmatpush1.bf16.msra.mxu0 0
    %138 = vmatprep.subr.bf16.mxu0 0
    %139 = vmatpush1.bf16.msra.mxu0 0
    %140 = vmatprep.subr.bf16.mxu0 0
    %141 = vmatpush1.bf16.msra.mxu0 0
    %142 = vmatprep.subr.bf16.mxu0 0
    %143 = vmatpush1.bf16.msra.mxu0 0
    %144 = vmatprep.subr.bf16.mxu0 0
    %145 = vmatpush1.bf16.msra.mxu0 0
    %146 = vmatprep.subr.bf16.mxu0 0
    %147 = vmatpush1.bf16.msra.mxu0 0
    %148 = vmatprep.subr.bf16.mxu0 0
    %149 = vmatpush1.bf16.msra.mxu0 0
    %150 = vmatprep.subr.bf16.mxu0 0
    %151 = vmatpush1.bf16.msra.mxu0 0
    %152 = vmatprep.subr.bf16.mxu0 0
    %153 = vmatpush1.bf16.msra.mxu0 0
    %154 = vmatprep.subr.bf16.mxu0 0
    %155 = vmatpush1.bf16.msra.mxu0 0
    %156 = vmatprep.mubr.bf16.mxu0 0
    %157 = vmatmul.mubr.bf16.gmra.mrb[0].mxu0 %v122
    %v158 = vpop.f32.mrb[0].mxu0
    %v159 = vadd.f32 %v107, %v158
    %v160 = vpop.f32.mrb[0].mxu0
    %v161 = vpop.f32.mrb[0].mxu0
    %v162 = vpop.f32.mrb[0].mxu0
    %163 = vdwg.mxu0
    %v164 = vpack.c.bf16 %v159, %v159
    %v165 = vld [vmem:[%s5] sm:$0xf]
    %v166 = vld [vmem:[%s5 + $0x4] sm:$0xf]
    %v167 = vld [vmem:[%s5 + $0x8] sm:$0xf]
    %v168 = vld [vmem:[%s5 + $0xc] sm:$0xf]
    %v169 = vld [vmem:[%s6] sm:$0x1]
    %v171 = vlaneseq
    %v172 = vshrl.u32 %v171, 7
    %v173 = vsub.s32 0, %v172
    %v174 = vrot.slane %v169, %v173
    %v180 = vunpack.c.l.b16 %v165
    %v181 = vunpack.c.l.b16 %v166
    %v182 = vunpack.c.l.b16 %v167
    %v183 = vunpack.c.l.b16 %v168
    %v184 = vpack.c.b16 %v181, %v180
    %v185 = vpack.c.b16 %v183, %v182
    %v189 = vsel %vm52, %v164, 0
    %191 = vmatprep.subr.bf16.mxu0 0
    %192 = vmatpush1.bf16.msra.mxu0 %v184
    %193 = vmatprep.subr.bf16.mxu0 0
    %194 = vmatpush1.bf16.msra.mxu0 %v185
    %195 = vmatprep.subr.bf16.mxu0 0
    %196 = vmatpush1.bf16.msra.mxu0 0
    %197 = vmatprep.subr.bf16.mxu0 0
    %198 = vmatpush1.bf16.msra.mxu0 0
    %199 = vmatprep.subr.bf16.mxu0 0
    %200 = vmatpush1.bf16.msra.mxu0 0
    %201 = vmatprep.subr.bf16.mxu0 0
    %202 = vmatpush1.bf16.msra.mxu0 0
    %203 = vmatprep.subr.bf16.mxu0 0
    %204 = vmatpush1.bf16.msra.mxu0 0
    %205 = vmatprep.subr.bf16.mxu0 0
    %206 = vmatpush1.bf16.msra.mxu0 0
    %207 = vmatprep.subr.bf16.mxu0 0
    %208 = vmatpush1.bf16.msra.mxu0 0
    %209 = vmatprep.subr.bf16.mxu0 0
    %210 = vmatpush1.bf16.msra.mxu0 0
    %211 = vmatprep.subr.bf16.mxu0 0
    %212 = vmatpush1.bf16.msra.mxu0 0
    %213 = vmatprep.subr.bf16.mxu0 0
    %214 = vmatpush1.bf16.msra.mxu0 0
    %215 = vmatprep.subr.bf16.mxu0 0
    %216 = vmatpush1.bf16.msra.mxu0 0
    %217 = vmatprep.subr.bf16.mxu0 0
    %218 = vmatpush1.bf16.msra.mxu0 0
    %219 = vmatprep.subr.bf16.mxu0 0
    %220 = vmatpush1.bf16.msra.mxu0 0
    %221 = vmatprep.subr.bf16.mxu0 0
    %222 = vmatpush1.bf16.msra.mxu0 0
    %223 = vmatprep.mubr.bf16.mxu0 0
    %224 = vmatmul.mubr.bf16.gmra.mrb[0].mxu0 %v189
    %v225 = vpop.f32.mrb[0].mxu0
    %v226 = vadd.f32 %v174, %v225
    %v227 = vpop.f32.mrb[0].mxu0
    %v228 = vpop.f32.mrb[0].mxu0
    %v229 = vpop.f32.mrb[0].mxu0
    %230 = vdwg.mxu0
    %v231 = vlaneseq
    %v232 = vand.u32 %v231, 127
    %vm233 = vcmp.lt.s32.totalorder %v232, 3
    %v234 = vsel %vm233, %v226, -1e+30
    %vm235 = vcmask 1041408
    %v236 = vsel %vm235, %v234, -inf
    %237 = vmax.xlane.f32.xlu0 %v236
    %v238 = vpop.xlane.xlu0 %237
    %v239 = vsub.f32 %v234, %v238
    %v240 = vmul.f32 %v239, 1.442695
    %v241 = vpow.pop %v240
    %v242 = vsel %vm235, %v241, 0.0
    %243 = vadd.xlane.f32.xlu0 %v242
    %v244 = vpop.xlane.xlu0 %243
    %v245 = vrcp.pop %v244
    %v246 = vmul.f32 %v241, %v245
    %247 = vst [vmem:[#allocation2] sm:$0x3] %v246
    // Predicated region
    $region30: #{bert_classifier_forward.19} parent=1 // pred_check
      _
    $region31: #{bert_classifier_forward.19} parent=1 // pred_check_branch
      %249 = sbr.rel (0) target = $region33
    $region32: #{bert_classifier_forward.19} parent=1 // pred_region
      %s251 = ssub.s32 32, 32
      %252 = vsyncadd [#allocation3], %s251
      %s254 = sshll.u32 [#allocation2], 4
      %s255 = int_to_ptr.vmem [resolvable:$true] %s254
      %257 = dma.vmem_to_hbm [thread:$0]  %s255, 32, %s7, [#allocation3]
    $region33: #{bert_classifier_forward.19} parent=1 // pred_fallthru
      _
    // Predicated region
    $region34: #{bert_classifier_forward.19} parent=1 // pred_check
      _
    $region35: #{bert_classifier_forward.19} parent=1 // pred_check_branch
      %259 = sbr.rel (0) target = $region37
    $region36: #{bert_classifier_forward.19} parent=1 // pred_region
      %260 = dma.done [#allocation3], 32
    $region37: #{bert_classifier_forward.19} parent=1 // pred_fallthru
      _
    %261 = vsyncpa [#allocation3], 1

</llo_original>
